<compile_context>
chip_gen: v6e
topology: v6e:2x2x1
jax: 0.10.0
libtpu: 0.0.40
codegen_flags: <defaults>
</compile_context>

<pallas_src>
import functools

import jax
import jax.numpy as jnp
from jax import lax
from jax.experimental import pallas as pl
from jax.experimental.pallas import tpu as pltpu

BN_EPS = 1e-5
KS = 7                    # SpatialGate conv kernel size
PAD = (KS - 1) // 2       # = 3


# ---------------------------------------------------------------------------
# In-kernel helpers
# ---------------------------------------------------------------------------
def _zero_pad_border(padbuf, H, W):
    """Clear only the 3-wide zero border of the padded map (interior is fully
    overwritten every grid step, so the full buffer is never re-zeroed)."""
    Hp, Wp = H + 2 * PAD, W + 2 * PAD
    zr = jnp.zeros((PAD, Wp), jnp.float32)
    padbuf[:PAD, :] = zr
    padbuf[PAD + H:, :] = zr
    zc = jnp.zeros((Hp, PAD), jnp.float32)
    padbuf[:, :PAD] = zc
    padbuf[:, PAD + W:] = zc


def _gate_map(padbuf, colbuf, w_ref, shift, H, W):
    """7x7 conv (weights pre-scaled by bn_scale/C) + shift -> sigmoid gate [H, W].

    Outer kx loop does one lane-shifted copy per tap column (7 cross-lane ops per
    step instead of 49); inner ky loop is sublane-offset loads + scalar FMAs into
    a few partial accumulators (restores VPU ILP on small maps)."""
    n_acc = 4 if H * W <= 16384 else 2
    accs = [jnp.zeros((H, W), jnp.float32) for _ in range(n_acc)]
    for kx in range(KS):
        colbuf[...] = padbuf[:, kx:kx + W]            # one lane shift per kx
        for ky in range(KS):
            accs[ky % n_acc] = accs[ky % n_acc] + w_ref[ky * KS + kx] * colbuf[ky:ky + H, :]
    conv = accs[0]
    for a in accs[1:]:
        conv = conv + a
    return jax.nn.sigmoid(conv + shift)


# ---------------------------------------------------------------------------
# Kernel A: plain 2-D path (used when W % 128 == 0, already lane-dense)
# ---------------------------------------------------------------------------
def _spatial_gate_kernel_2d(x_ref, w_ref, bn_ref, out_ref, padbuf, colbuf):
    # x_ref/out_ref : [1, C, H, W]   w_ref : SMEM [49]   bn_ref : SMEM [1]
    _, C, H, W = x_ref.shape
    _zero_pad_border(padbuf, H, W)
    # Channel SUM (1/C folded into weights); x is not kept live across the conv.
    padbuf[PAD:PAD + H, PAD:PAD + W] = jnp.sum(x_ref[0].astype(jnp.float32), axis=0)
    scale = _gate_map(padbuf, colbuf, w_ref, bn_ref[0], H, W)            # [H, W]
    out_ref[0] = (x_ref[0].astype(jnp.float32) * scale[None, :, :]).astype(out_ref.dtype)


# ---------------------------------------------------------------------------
# Kernel B: flat (lane-dense) path for W % 128 != 0
# ---------------------------------------------------------------------------
def _spatial_gate_kernel_flat(x_ref, w_ref, bn_ref, out_ref,
                              padbuf, colbuf, flatbuf, *, H, W):
    # x_ref/out_ref : [1, C, H*W]  -> the big loads/stores are lane-dense.
    _zero_pad_border(padbuf, H, W)
    # Lane-dense channel SUM on the flat view.
    flatbuf[...] = jnp.sum(x_ref[0].astype(jnp.float32), axis=0, keepdims=True)  # [1, H*W]
    # Scatter the flat sum into the padded 2-D map (tiny: H short row stores).
    for y in range(H):
        padbuf[PAD + y, PAD:PAD + W] = flatbuf[0, pl.ds(y * W, W)]
    scale = _gate_map(padbuf, colbuf, w_ref, bn_ref[0], H, W)                    # [H, W]
    # Gather the gate map back to a lane-dense flat row (stage via padbuf interior;
    # its zero border is untouched so later steps stay correct).
    padbuf[PAD:PAD + H, PAD:PAD + W] = scale
    for y in range(H):
        flatbuf[0, pl.ds(y * W, W)] = padbuf[PAD + y, PAD:PAD + W]
    # Big gating multiply + store at full lane width.
    out_ref[0] = (x_ref[0].astype(jnp.float32) * flatbuf[...]).astype(out_ref.dtype)


# ---------------------------------------------------------------------------
# Wrapper: fold BN and 1/C into the weights, pick layout, launch one step per N.
# ---------------------------------------------------------------------------
def spatial_gate(x_nchw, p):
    N, C, H, W = x_nchw.shape
    dt = x_nchw.dtype                       # no wrapper upcast: bf16 stays bf16

    bn_scale = p['bn_gamma'] * lax.rsqrt(p['bn_var'] + BN_EPS)
    w_folded = (p['wsp'] * (bn_scale / C)).reshape(KS * KS).astype(jnp.float32)  # [49]
    bn_shift = (p['bn_beta'] - p['bn_mean'] * bn_scale).reshape(1).astype(jnp.float32)

    # Raise the scoped VMEM limit only when whole-image blocks need it (v6e advice).
    block_bytes = C * H * W * jnp.dtype(dt).itemsize
    scratch_bytes = 4 * ((H + 2 * PAD) * (W + 2 * PAD) + (H + 2 * PAD) * W + H * W)
    need = 4 * block_bytes + scratch_bytes + (1 << 20)    # double-buffered in + out
    vmem_limit = int(min(need, 64 << 20)) if need > (32 << 20) else None
    cparams = pltpu.CompilerParams(dimension_semantics=("parallel",),
                                   vmem_limit_bytes=vmem_limit)
    smem = pl.BlockSpec(memory_space=pltpu.MemorySpace.SMEM)

    use_flat = (W % 128 != 0) and (H <= 256)   # lane-dense stores for odd widths
    if use_flat:
        HW = H * W
        out = pl.pallas_call(
            functools.partial(_spatial_gate_kernel_flat, H=H, W=W),
            out_shape=jax.ShapeDtypeStruct((N, C, HW), dt),
            grid=(N,),
            in_specs=[pl.BlockSpec((1, C, HW), lambda n: (n, 0, 0)), smem, smem],
            out_specs=pl.BlockSpec((1, C, HW), lambda n: (n, 0, 0)),
            scratch_shapes=[pltpu.VMEM((H + 2 * PAD, W + 2 * PAD), jnp.float32),
                            pltpu.VMEM((H + 2 * PAD, W), jnp.float32),
                            pltpu.VMEM((1, HW), jnp.float32)],
            compiler_params=cparams,
        )(x_nchw.reshape(N, C, HW), w_folded, bn_shift)   # reshape outside is free
        return out.reshape(N, C, H, W)

    return pl.pallas_call(
        _spatial_gate_kernel_2d,
        out_shape=jax.ShapeDtypeStruct((N, C, H, W), dt),
        grid=(N,),
        in_specs=[pl.BlockSpec((1, C, H, W), lambda n: (n, 0, 0, 0)), smem, smem],
        out_specs=pl.BlockSpec((1, C, H, W), lambda n: (n, 0, 0, 0)),
        scratch_shapes=[pltpu.VMEM((H + 2 * PAD, W + 2 * PAD), jnp.float32),
                        pltpu.VMEM((H + 2 * PAD, W), jnp.float32)],
        compiler_params=cparams,
    )(x_nchw, w_folded, bn_shift)


# ---------------------------------------------------------------------------
# Deterministic parameter init (shapes from SpatialGate.__init__ / BasicConv)
# ---------------------------------------------------------------------------
def init_params(key):
    ks = jax.random.split(key, 5)
    return dict(
        wsp=0.05 * jax.random.normal(ks[0], (KS, KS), jnp.float32),   # Conv2d(1,1,7), no bias
        bn_gamma=1.0 + 0.1 * jax.random.normal(ks[1], (), jnp.float32),
        bn_beta=0.1 * jax.random.normal(ks[2], (), jnp.float32),
        bn_mean=0.1 * jax.random.normal(ks[3], (), jnp.float32),
        bn_var=0.5 + jax.random.uniform(ks[4], (), jnp.float32),
    )


# ---------------------------------------------------------------------------
# Pure-JAX reference (same eval-mode BN semantics) for the correctness check
# ---------------------------------------------------------------------------
def reference_forward(x_nchw, p):
    x = x_nchw.astype(jnp.float32)
    cmean = jnp.mean(x, axis=1, keepdims=True)                      # [N,1,H,W]
    conv = lax.conv_general_dilated(
        cmean, p['wsp'].reshape(1, 1, KS, KS), (1, 1),
        ((PAD, PAD), (PAD, PAD)),
        dimension_numbers=('NCHW', 'OIHW', 'NCHW'),
        precision=lax.Precision.HIGHEST)
    bn_scale = p['bn_gamma'] * lax.rsqrt(p['bn_var'] + BN_EPS)
    sp = conv * bn_scale + (p['bn_beta'] - p['bn_mean'] * bn_scale)
    return x * jax.nn.sigmoid(sp)


if __name__ == "__main__":
    key = jax.random.PRNGKey(0)
    kx_, kp = jax.random.split(key)
    params = init_params(kp)
    fwd = jax.jit(spatial_gate)

    # Primary check: small odd-width shape -> exercises the lane-dense flat path.
    x = jax.random.normal(kx_, (2, 4, 16, 16), jnp.float32)
    out = fwd(x, params)
    jax.block_until_ready(out)
    ref = reference_forward(x, params)
    err = float(jnp.max(jnp.abs(out - ref)))
    assert out.shape == x.shape, f"bad shape {out.shape}"
    assert err < 1e-4, f"flat-path mismatch vs reference: max abs err = {err}"

    # Secondary check: lane-aligned width -> exercises the plain 2-D path.
    x2 = jax.random.normal(kx_, (2, 4, 8, 128), jnp.float32)
    out2 = fwd(x2, params)
    jax.block_until_ready(out2)
    ref2 = reference_forward(x2, params)
    err2 = float(jnp.max(jnp.abs(out2 - ref2)))
    assert out2.shape == x2.shape, f"bad shape {out2.shape}"
    assert err2 < 1e-4, f"2-D-path mismatch vs reference: max abs err = {err2}"

    print("KERNEL_OK")
</pallas_src>

<mosaic_0001>
module attributes {stable_mosaic.version = 11 : i64} {
  func.func @_spatial_gate_kernel_flat(%arg0: i32, %arg1: memref<1x4x256xf32, #tpu.memory_space<vmem>>, %arg2: memref<49xf32, #tpu.memory_space<smem>>, %arg3: memref<1xf32, #tpu.memory_space<smem>>, %arg4: memref<1x4x256xf32, #tpu.memory_space<vmem>>, %arg5: memref<22x22xf32, #tpu.memory_space<vmem>>, %arg6: memref<22x16xf32, #tpu.memory_space<vmem>>, %arg7: memref<1x256xf32, #tpu.memory_space<vmem>>) attributes {dimension_semantics = [#tpu.dimension_semantics<parallel>], iteration_bounds = array<i64: 2>, scalar_prefetch = 0 : i64, scratch_operands = 3 : i64, tpu.core_type = #tpu.core_type<tc>, window_params = [{transform_indices = @transform_0, window_bounds = array<i64: 1, 4, 256>}, {transform_indices = @transform_1, window_bounds = array<i64: 49>}, {transform_indices = @transform_2, window_bounds = array<i64: 1>}, {transform_indices = @transform_3, window_bounds = array<i64: 1, 4, 256>}]} {
    %cst = arith.constant 0.000000e+00 : f32
    %0 = vector.broadcast %cst : f32 to vector<3x22xf32>
    %c0 = arith.constant 0 : index
    %c0_0 = arith.constant 0 : index
    %1 = vector.load %arg5[%c0, %c0_0] : memref<22x22xf32, #tpu.memory_space<vmem>>, vector<3x22xf32>
    tpu.vector_store %arg5[%c0, %c0_0], %0 {strides = array<i32>} : memref<22x22xf32, #tpu.memory_space<vmem>>, vector<3x22xf32>,
    %c19 = arith.constant 19 : index
    %c0_1 = arith.constant 0 : index
    %2 = vector.load %arg5[%c19, %c0_1] : memref<22x22xf32, #tpu.memory_space<vmem>>, vector<3x22xf32>
    tpu.vector_store %arg5[%c19, %c0_1], %0 {strides = array<i32>} : memref<22x22xf32, #tpu.memory_space<vmem>>, vector<3x22xf32>,
    %cst_2 = arith.constant 0.000000e+00 : f32
    %3 = vector.broadcast %cst_2 : f32 to vector<22x3xf32>
    %c0_3 = arith.constant 0 : index
    %c0_4 = arith.constant 0 : index
    %4 = vector.load %arg5[%c0_3, %c0_4] : memref<22x22xf32, #tpu.memory_space<vmem>>, vector<22x3xf32>
    tpu.vector_store %arg5[%c0_3, %c0_4], %3 {strides = array<i32>} : memref<22x22xf32, #tpu.memory_space<vmem>>, vector<22x3xf32>,
    %c0_5 = arith.constant 0 : index
    %c19_6 = arith.constant 19 : index
    %5 = vector.load %arg5[%c0_5, %c19_6] : memref<22x22xf32, #tpu.memory_space<vmem>>, vector<22x3xf32>
    tpu.vector_store %arg5[%c0_5, %c19_6], %3 {strides = array<i32>} : memref<22x22xf32, #tpu.memory_space<vmem>>, vector<22x3xf32>,
    %c0_7 = arith.constant 0 : index
    %c0_8 = arith.constant 0 : index
    %c0_9 = arith.constant 0 : index
    %6 = vector.load %arg1[%c0_7, %c0_8, %c0_9] : memref<1x4x256xf32, #tpu.memory_space<vmem>>, vector<1x4x256xf32>
    %7 = vector.shape_cast %6 : vector<1x4x256xf32> to vector<4x256xf32>
    %cst_10 = arith.constant dense<0.000000e+00> : vector<256xf32>
    %8 = vector.multi_reduction <add>, %7, %cst_10 [0] : vector<4x256xf32> to vector<256xf32>
    %9 = vector.shape_cast %8 : vector<256xf32> to vector<1x256xf32>
    %c0_11 = arith.constant 0 : index
    %c0_12 = arith.constant 0 : index
    %10 = vector.load %arg7[%c0_11, %c0_12] : memref<1x256xf32, #tpu.memory_space<vmem>>, vector<1x256xf32>
    tpu.vector_store %arg7[%c0_11, %c0_12], %9 {strides = array<i32>} : memref<1x256xf32, #tpu.memory_space<vmem>>, vector<1x256xf32>,
    %c0_13 = arith.constant 0 : index
    %c0_14 = arith.constant 0 : index
    %11 = vector.load %arg7[%c0_13, %c0_14] : memref<1x256xf32, #tpu.memory_space<vmem>>, vector<1x16xf32>
    %12 = vector.shape_cast %11 : vector<1x16xf32> to vector<16xf32>
    %c3 = arith.constant 3 : index
    %c3_15 = arith.constant 3 : index
    %13 = vector.load %arg5[%c3, %c3_15] : memref<22x22xf32, #tpu.memory_space<vmem>>, vector<1x16xf32>
    %14 = vector.shape_cast %13 : vector<1x16xf32> to vector<16xf32>
    %15 = vector.shape_cast %12 : vector<16xf32> to vector<1x16xf32>
    tpu.vector_store %arg5[%c3, %c3_15], %15 {strides = array<i32>} : memref<22x22xf32, #tpu.memory_space<vmem>>, vector<1x16xf32>,
    %c0_16 = arith.constant 0 : index
    %c16 = arith.constant 16 : index
    %16 = vector.load %arg7[%c0_16, %c16] : memref<1x256xf32, #tpu.memory_space<vmem>>, vector<1x16xf32>
    %17 = vector.shape_cast %16 : vector<1x16xf32> to vector<16xf32>
    %c4 = arith.constant 4 : index
    %c3_17 = arith.constant 3 : index
    %18 = vector.load %arg5[%c4, %c3_17] : memref<22x22xf32, #tpu.memory_space<vmem>>, vector<1x16xf32>
    %19 = vector.shape_cast %18 : vector<1x16xf32> to vector<16xf32>
    %20 = vector.shape_cast %17 : vector<16xf32> to vector<1x16xf32>
    tpu.vector_store %arg5[%c4, %c3_17], %20 {strides = array<i32>} : memref<22x22xf32, #tpu.memory_space<vmem>>, vector<1x16xf32>,
    %c0_18 = arith.constant 0 : index
    %c32 = arith.constant 32 : index
    %21 = vector.load %arg7[%c0_18, %c32] : memref<1x256xf32, #tpu.memory_space<vmem>>, vector<1x16xf32>
    %22 = vector.shape_cast %21 : vector<1x16xf32> to vector<16xf32>
    %c5 = arith.constant 5 : index
    %c3_19 = arith.constant 3 : index
    %23 = vector.load %arg5[%c5, %c3_19] : memref<22x22xf32, #tpu.memory_space<vmem>>, vector<1x16xf32>
    %24 = vector.shape_cast %23 : vector<1x16xf32> to vector<16xf32>
    %25 = vector.shape_cast %22 : vector<16xf32> to vector<1x16xf32>
    tpu.vector_store %arg5[%c5, %c3_19], %25 {strides = array<i32>} : memref<22x22xf32, #tpu.memory_space<vmem>>, vector<1x16xf32>,
    %c0_20 = arith.constant 0 : index
    %c48 = arith.constant 48 : index
    %26 = vector.load %arg7[%c0_20, %c48] : memref<1x256xf32, #tpu.memory_space<vmem>>, vector<1x16xf32>
    %27 = vector.shape_cast %26 : vector<1x16xf32> to vector<16xf32>
    %c6 = arith.constant 6 : index
    %c3_21 = arith.constant 3 : index
    %28 = vector.load %arg5[%c6, %c3_21] : memref<22x22xf32, #tpu.memory_space<vmem>>, vector<1x16xf32>
    %29 = vector.shape_cast %28 : vector<1x16xf32> to vector<16xf32>
    %30 = vector.shape_cast %27 : vector<16xf32> to vector<1x16xf32>
    tpu.vector_store %arg5[%c6, %c3_21], %30 {strides = array<i32>} : memref<22x22xf32, #tpu.memory_space<vmem>>, vector<1x16xf32>,
    %c0_22 = arith.constant 0 : index
    %c64 = arith.constant 64 : index
    %31 = vector.load %arg7[%c0_22, %c64] : memref<1x256xf32, #tpu.memory_space<vmem>>, vector<1x16xf32>
    %32 = vector.shape_cast %31 : vector<1x16xf32> to vector<16xf32>
    %c7 = arith.constant 7 : index
    %c3_23 = arith.constant 3 : index
    %33 = vector.load %arg5[%c7, %c3_23] : memref<22x22xf32, #tpu.memory_space<vmem>>, vector<1x16xf32>
    %34 = vector.shape_cast %33 : vector<1x16xf32> to vector<16xf32>
    %35 = vector.shape_cast %32 : vector<16xf32> to vector<1x16xf32>
    tpu.vector_store %arg5[%c7, %c3_23], %35 {strides = array<i32>} : memref<22x22xf32, #tpu.memory_space<vmem>>, vector<1x16xf32>,
    %c0_24 = arith.constant 0 : index
    %c80 = arith.constant 80 : index
    %36 = vector.load %arg7[%c0_24, %c80] : memref<1x256xf32, #tpu.memory_space<vmem>>, vector<1x16xf32>
    %37 = vector.shape_cast %36 : vector<1x16xf32> to vector<16xf32>
    %c8 = arith.constant 8 : index
    %c3_25 = arith.constant 3 : index
    %38 = vector.load %arg5[%c8, %c3_25] : memref<22x22xf32, #tpu.memory_space<vmem>>, vector<1x16xf32>
    %39 = vector.shape_cast %38 : vector<1x16xf32> to vector<16xf32>
    %40 = vector.shape_cast %37 : vector<16xf32> to vector<1x16xf32>
    tpu.vector_store %arg5[%c8, %c3_25], %40 {strides = array<i32>} : memref<22x22xf32, #tpu.memory_space<vmem>>, vector<1x16xf32>,
    %c0_26 = arith.constant 0 : index
    %c96 = arith.constant 96 : index
    %41 = vector.load %arg7[%c0_26, %c96] : memref<1x256xf32, #tpu.memory_space<vmem>>, vector<1x16xf32>
    %42 = vector.shape_cast %41 : vector<1x16xf32> to vector<16xf32>
    %c9 = arith.constant 9 : index
    %c3_27 = arith.constant 3 : index
    %43 = vector.load %arg5[%c9, %c3_27] : memref<22x22xf32, #tpu.memory_space<vmem>>, vector<1x16xf32>
    %44 = vector.shape_cast %43 : vector<1x16xf32> to vector<16xf32>
    %45 = vector.shape_cast %42 : vector<16xf32> to vector<1x16xf32>
    tpu.vector_store %arg5[%c9, %c3_27], %45 {strides = array<i32>} : memref<22x22xf32, #tpu.memory_space<vmem>>, vector<1x16xf32>,
    %c0_28 = arith.constant 0 : index
    %c112 = arith.constant 112 : index
    %46 = vector.load %arg7[%c0_28, %c112] : memref<1x256xf32, #tpu.memory_space<vmem>>, vector<1x16xf32>
    %47 = vector.shape_cast %46 : vector<1x16xf32> to vector<16xf32>
    %c10 = arith.constant 10 : index
    %c3_29 = arith.constant 3 : index
    %48 = vector.load %arg5[%c10, %c3_29] : memref<22x22xf32, #tpu.memory_space<vmem>>, vector<1x16xf32>
    %49 = vector.shape_cast %48 : vector<1x16xf32> to vector<16xf32>
    %50 = vector.shape_cast %47 : vector<16xf32> to vector<1x16xf32>
    tpu.vector_store %arg5[%c10, %c3_29], %50 {strides = array<i32>} : memref<22x22xf32, #tpu.memory_space<vmem>>, vector<1x16xf32>,
    %c0_30 = arith.constant 0 : index
    %c128 = arith.constant 128 : index
    %51 = vector.load %arg7[%c0_30, %c128] : memref<1x256xf32, #tpu.memory_space<vmem>>, vector<1x16xf32>
    %52 = vector.shape_cast %51 : vector<1x16xf32> to vector<16xf32>
    %c11 = arith.constant 11 : index
    %c3_31 = arith.constant 3 : index
    %53 = vector.load %arg5[%c11, %c3_31] : memref<22x22xf32, #tpu.memory_space<vmem>>, vector<1x16xf32>
    %54 = vector.shape_cast %53 : vector<1x16xf32> to vector<16xf32>
    %55 = vector.shape_cast %52 : vector<16xf32> to vector<1x16xf32>
    tpu.vector_store %arg5[%c11, %c3_31], %55 {strides = array<i32>} : memref<22x22xf32, #tpu.memory_space<vmem>>, vector<1x16xf32>,
    %c0_32 = arith.constant 0 : index
    %c144 = arith.constant 144 : index
    %56 = vector.load %arg7[%c0_32, %c144] : memref<1x256xf32, #tpu.memory_space<vmem>>, vector<1x16xf32>
    %57 = vector.shape_cast %56 : vector<1x16xf32> to vector<16xf32>
    %c12 = arith.constant 12 : index
    %c3_33 = arith.constant 3 : index
    %58 = vector.load %arg5[%c12, %c3_33] : memref<22x22xf32, #tpu.memory_space<vmem>>, vector<1x16xf32>
    %59 = vector.shape_cast %58 : vector<1x16xf32> to vector<16xf32>
    %60 = vector.shape_cast %57 : vector<16xf32> to vector<1x16xf32>
    tpu.vector_store %arg5[%c12, %c3_33], %60 {strides = array<i32>} : memref<22x22xf32, #tpu.memory_space<vmem>>, vector<1x16xf32>,
    %c0_34 = arith.constant 0 : index
    %c160 = arith.constant 160 : index
    %61 = vector.load %arg7[%c0_34, %c160] : memref<1x256xf32, #tpu.memory_space<vmem>>, vector<1x16xf32>
    %62 = vector.shape_cast %61 : vector<1x16xf32> to vector<16xf32>
    %c13 = arith.constant 13 : index
    %c3_35 = arith.constant 3 : index
    %63 = vector.load %arg5[%c13, %c3_35] : memref<22x22xf32, #tpu.memory_space<vmem>>, vector<1x16xf32>
    %64 = vector.shape_cast %63 : vector<1x16xf32> to vector<16xf32>
    %65 = vector.shape_cast %62 : vector<16xf32> to vector<1x16xf32>
    tpu.vector_store %arg5[%c13, %c3_35], %65 {strides = array<i32>} : memref<22x22xf32, #tpu.memory_space<vmem>>, vector<1x16xf32>,
    %c0_36 = arith.constant 0 : index
    %c176 = arith.constant 176 : index
    %66 = vector.load %arg7[%c0_36, %c176] : memref<1x256xf32, #tpu.memory_space<vmem>>, vector<1x16xf32>
    %67 = vector.shape_cast %66 : vector<1x16xf32> to vector<16xf32>
    %c14 = arith.constant 14 : index
    %c3_37 = arith.constant 3 : index
    %68 = vector.load %arg5[%c14, %c3_37] : memref<22x22xf32, #tpu.memory_space<vmem>>, vector<1x16xf32>
    %69 = vector.shape_cast %68 : vector<1x16xf32> to vector<16xf32>
    %70 = vector.shape_cast %67 : vector<16xf32> to vector<1x16xf32>
    tpu.vector_store %arg5[%c14, %c3_37], %70 {strides = array<i32>} : memref<22x22xf32, #tpu.memory_space<vmem>>, vector<1x16xf32>,
    %c0_38 = arith.constant 0 : index
    %c192 = arith.constant 192 : index
    %71 = vector.load %arg7[%c0_38, %c192] : memref<1x256xf32, #tpu.memory_space<vmem>>, vector<1x16xf32>
    %72 = vector.shape_cast %71 : vector<1x16xf32> to vector<16xf32>
    %c15 = arith.constant 15 : index
    %c3_39 = arith.constant 3 : index
    %73 = vector.load %arg5[%c15, %c3_39] : memref<22x22xf32, #tpu.memory_space<vmem>>, vector<1x16xf32>
    %74 = vector.shape_cast %73 : vector<1x16xf32> to vector<16xf32>
    %75 = vector.shape_cast %72 : vector<16xf32> to vector<1x16xf32>
    tpu.vector_store %arg5[%c15, %c3_39], %75 {strides = array<i32>} : memref<22x22xf32, #tpu.memory_space<vmem>>, vector<1x16xf32>,
    %c0_40 = arith.constant 0 : index
    %c208 = arith.constant 208 : index
    %76 = vector.load %arg7[%c0_40, %c208] : memref<1x256xf32, #tpu.memory_space<vmem>>, vector<1x16xf32>
    %77 = vector.shape_cast %76 : vector<1x16xf32> to vector<16xf32>
    %c16_41 = arith.constant 16 : index
    %c3_42 = arith.constant 3 : index
    %78 = vector.load %arg5[%c16_41, %c3_42] : memref<22x22xf32, #tpu.memory_space<vmem>>, vector<1x16xf32>
    %79 = vector.shape_cast %78 : vector<1x16xf32> to vector<16xf32>
    %80 = vector.shape_cast %77 : vector<16xf32> to vector<1x16xf32>
    tpu.vector_store %arg5[%c16_41, %c3_42], %80 {strides = array<i32>} : memref<22x22xf32, #tpu.memory_space<vmem>>, vector<1x16xf32>,
    %c0_43 = arith.constant 0 : index
    %c224 = arith.constant 224 : index
    %81 = vector.load %arg7[%c0_43, %c224] : memref<1x256xf32, #tpu.memory_space<vmem>>, vector<1x16xf32>
    %82 = vector.shape_cast %81 : vector<1x16xf32> to vector<16xf32>
    %c17 = arith.constant 17 : index
    %c3_44 = arith.constant 3 : index
    %83 = vector.load %arg5[%c17, %c3_44] : memref<22x22xf32, #tpu.memory_space<vmem>>, vector<1x16xf32>
    %84 = vector.shape_cast %83 : vector<1x16xf32> to vector<16xf32>
    %85 = vector.shape_cast %82 : vector<16xf32> to vector<1x16xf32>
    tpu.vector_store %arg5[%c17, %c3_44], %85 {strides = array<i32>} : memref<22x22xf32, #tpu.memory_space<vmem>>, vector<1x16xf32>,
    %c0_45 = arith.constant 0 : index
    %c240 = arith.constant 240 : index
    %86 = vector.load %arg7[%c0_45, %c240] : memref<1x256xf32, #tpu.memory_space<vmem>>, vector<1x16xf32>
    %87 = vector.shape_cast %86 : vector<1x16xf32> to vector<16xf32>
    %c18 = arith.constant 18 : index
    %c3_46 = arith.constant 3 : index
    %88 = vector.load %arg5[%c18, %c3_46] : memref<22x22xf32, #tpu.memory_space<vmem>>, vector<1x16xf32>
    %89 = vector.shape_cast %88 : vector<1x16xf32> to vector<16xf32>
    %90 = vector.shape_cast %87 : vector<16xf32> to vector<1x16xf32>
    tpu.vector_store %arg5[%c18, %c3_46], %90 {strides = array<i32>} : memref<22x22xf32, #tpu.memory_space<vmem>>, vector<1x16xf32>,
    %c0_47 = arith.constant 0 : index
    %91 = memref.load %arg3[%c0_47] : memref<1xf32, #tpu.memory_space<smem>>
    %cst_48 = arith.constant 0.000000e+00 : f32
    %92 = vector.broadcast %cst_48 : f32 to vector<16x16xf32>
    %cst_49 = arith.constant 0.000000e+00 : f32
    %93 = vector.broadcast %cst_49 : f32 to vector<16x16xf32>
    %cst_50 = arith.constant 0.000000e+00 : f32
    %94 = vector.broadcast %cst_50 : f32 to vector<16x16xf32>
    %cst_51 = arith.constant 0.000000e+00 : f32
    %95 = vector.broadcast %cst_51 : f32 to vector<16x16xf32>
    %c0_52 = arith.constant 0 : index
    %c0_53 = arith.constant 0 : index
    %96 = vector.load %arg5[%c0_52, %c0_53] : memref<22x22xf32, #tpu.memory_space<vmem>>, vector<22x16xf32>
    %c0_54 = arith.constant 0 : index
    %c0_55 = arith.constant 0 : index
    %97 = vector.load %arg6[%c0_54, %c0_55] : memref<22x16xf32, #tpu.memory_space<vmem>>, vector<22x16xf32>
    tpu.vector_store %arg6[%c0_54, %c0_55], %96 {strides = array<i32>} : memref<22x16xf32, #tpu.memory_space<vmem>>, vector<22x16xf32>,
    %c0_56 = arith.constant 0 : index
    %98 = memref.load %arg2[%c0_56] : memref<49xf32, #tpu.memory_space<smem>>
    %c0_57 = arith.constant 0 : index
    %c0_58 = arith.constant 0 : index
    %99 = vector.load %arg6[%c0_57, %c0_58] : memref<22x16xf32, #tpu.memory_space<vmem>>, vector<16x16xf32>
    %100 = vector.broadcast %98 : f32 to vector<16x16xf32>
    %101 = arith.mulf %100, %99 : vector<16x16xf32>
    %102 = arith.addf %92, %101 : vector<16x16xf32>
    %c7_59 = arith.constant 7 : index
    %103 = memref.load %arg2[%c7_59] : memref<49xf32, #tpu.memory_space<smem>>
    %c1 = arith.constant 1 : index
    %c0_60 = arith.constant 0 : index
    %104 = vector.load %arg6[%c1, %c0_60] : memref<22x16xf32, #tpu.memory_space<vmem>>, vector<16x16xf32>
    %105 = vector.broadcast %103 : f32 to vector<16x16xf32>
    %106 = arith.mulf %105, %104 : vector<16x16xf32>
    %107 = arith.addf %93, %106 : vector<16x16xf32>
    %c14_61 = arith.constant 14 : index
    %108 = memref.load %arg2[%c14_61] : memref<49xf32, #tpu.memory_space<smem>>
    %c2 = arith.constant 2 : index
    %c0_62 = arith.constant 0 : index
    %109 = vector.load %arg6[%c2, %c0_62] : memref<22x16xf32, #tpu.memory_space<vmem>>, vector<16x16xf32>
    %110 = vector.broadcast %108 : f32 to vector<16x16xf32>
    %111 = arith.mulf %110, %109 : vector<16x16xf32>
    %112 = arith.addf %94, %111 : vector<16x16xf32>
    %c21 = arith.constant 21 : index
    %113 = memref.load %arg2[%c21] : memref<49xf32, #tpu.memory_space<smem>>
    %c3_63 = arith.constant 3 : index
    %c0_64 = arith.constant 0 : index
    %114 = vector.load %arg6[%c3_63, %c0_64] : memref<22x16xf32, #tpu.memory_space<vmem>>, vector<16x16xf32>
    %115 = vector.broadcast %113 : f32 to vector<16x16xf32>
    %116 = arith.mulf %115, %114 : vector<16x16xf32>
    %117 = arith.addf %95, %116 : vector<16x16xf32>
    %c28 = arith.constant 28 : index
    %118 = memref.load %arg2[%c28] : memref<49xf32, #tpu.memory_space<smem>>
    %c4_65 = arith.constant 4 : index
    %c0_66 = arith.constant 0 : index
    %119 = vector.load %arg6[%c4_65, %c0_66] : memref<22x16xf32, #tpu.memory_space<vmem>>, vector<16x16xf32>
    %120 = vector.broadcast %118 : f32 to vector<16x16xf32>
    %121 = arith.mulf %120, %119 : vector<16x16xf32>
    %122 = arith.addf %102, %121 : vector<16x16xf32>
    %c35 = arith.constant 35 : index
    %123 = memref.load %arg2[%c35] : memref<49xf32, #tpu.memory_space<smem>>
    %c5_67 = arith.constant 5 : index
    %c0_68 = arith.constant 0 : index
    %124 = vector.load %arg6[%c5_67, %c0_68] : memref<22x16xf32, #tpu.memory_space<vmem>>, vector<16x16xf32>
    %125 = vector.broadcast %123 : f32 to vector<16x16xf32>
    %126 = arith.mulf %125, %124 : vector<16x16xf32>
    %127 = arith.addf %107, %126 : vector<16x16xf32>
    %c42 = arith.constant 42 : index
    %128 = memref.load %arg2[%c42] : memref<49xf32, #tpu.memory_space<smem>>
    %c6_69 = arith.constant 6 : index
    %c0_70 = arith.constant 0 : index
    %129 = vector.load %arg6[%c6_69, %c0_70] : memref<22x16xf32, #tpu.memory_space<vmem>>, vector<16x16xf32>
    %130 = vector.broadcast %128 : f32 to vector<16x16xf32>
    %131 = arith.mulf %130, %129 : vector<16x16xf32>
    %132 = arith.addf %112, %131 : vector<16x16xf32>
    %c0_71 = arith.constant 0 : index
    %c1_72 = arith.constant 1 : index
    %133 = vector.load %arg5[%c0_71, %c1_72] : memref<22x22xf32, #tpu.memory_space<vmem>>, vector<22x16xf32>
    %c0_73 = arith.constant 0 : index
    %c0_74 = arith.constant 0 : index
    %134 = vector.load %arg6[%c0_73, %c0_74] : memref<22x16xf32, #tpu.memory_space<vmem>>, vector<22x16xf32>
    tpu.vector_store %arg6[%c0_73, %c0_74], %133 {strides = array<i32>} : memref<22x16xf32, #tpu.memory_space<vmem>>, vector<22x16xf32>,
    %c1_75 = arith.constant 1 : index
    %135 = memref.load %arg2[%c1_75] : memref<49xf32, #tpu.memory_space<smem>>
    %c0_76 = arith.constant 0 : index
    %c0_77 = arith.constant 0 : index
    %136 = vector.load %arg6[%c0_76, %c0_77] : memref<22x16xf32, #tpu.memory_space<vmem>>, vector<16x16xf32>
    %137 = vector.broadcast %135 : f32 to vector<16x16xf32>
    %138 = arith.mulf %137, %136 : vector<16x16xf32>
    %139 = arith.addf %122, %138 : vector<16x16xf32>
    %c8_78 = arith.constant 8 : index
    %140 = memref.load %arg2[%c8_78] : memref<49xf32, #tpu.memory_space<smem>>
    %c1_79 = arith.constant 1 : index
    %c0_80 = arith.constant 0 : index
    %141 = vector.load %arg6[%c1_79, %c0_80] : memref<22x16xf32, #tpu.memory_space<vmem>>, vector<16x16xf32>
    %142 = vector.broadcast %140 : f32 to vector<16x16xf32>
    %143 = arith.mulf %142, %141 : vector<16x16xf32>
    %144 = arith.addf %127, %143 : vector<16x16xf32>
    %c15_81 = arith.constant 15 : index
    %145 = memref.load %arg2[%c15_81] : memref<49xf32, #tpu.memory_space<smem>>
    %c2_82 = arith.constant 2 : index
    %c0_83 = arith.constant 0 : index
    %146 = vector.load %arg6[%c2_82, %c0_83] : memref<22x16xf32, #tpu.memory_space<vmem>>, vector<16x16xf32>
    %147 = vector.broadcast %145 : f32 to vector<16x16xf32>
    %148 = arith.mulf %147, %146 : vector<16x16xf32>
    %149 = arith.addf %132, %148 : vector<16x16xf32>
    %c22 = arith.constant 22 : index
    %150 = memref.load %arg2[%c22] : memref<49xf32, #tpu.memory_space<smem>>
    %c3_84 = arith.constant 3 : index
    %c0_85 = arith.constant 0 : index
    %151 = vector.load %arg6[%c3_84, %c0_85] : memref<22x16xf32, #tpu.memory_space<vmem>>, vector<16x16xf32>
    %152 = vector.broadcast %150 : f32 to vector<16x16xf32>
    %153 = arith.mulf %152, %151 : vector<16x16xf32>
    %154 = arith.addf %117, %153 : vector<16x16xf32>
    %c29 = arith.constant 29 : index
    %155 = memref.load %arg2[%c29] : memref<49xf32, #tpu.memory_space<smem>>
    %c4_86 = arith.constant 4 : index
    %c0_87 = arith.constant 0 : index
    %156 = vector.load %arg6[%c4_86, %c0_87] : memref<22x16xf32, #tpu.memory_space<vmem>>, vector<16x16xf32>
    %157 = vector.broadcast %155 : f32 to vector<16x16xf32>
    %158 = arith.mulf %157, %156 : vector<16x16xf32>
    %159 = arith.addf %139, %158 : vector<16x16xf32>
    %c36 = arith.constant 36 : index
    %160 = memref.load %arg2[%c36] : memref<49xf32, #tpu.memory_space<smem>>
    %c5_88 = arith.constant 5 : index
    %c0_89 = arith.constant 0 : index
    %161 = vector.load %arg6[%c5_88, %c0_89] : memref<22x16xf32, #tpu.memory_space<vmem>>, vector<16x16xf32>
    %162 = vector.broadcast %160 : f32 to vector<16x16xf32>
    %163 = arith.mulf %162, %161 : vector<16x16xf32>
    %164 = arith.addf %144, %163 : vector<16x16xf32>
    %c43 = arith.constant 43 : index
    %165 = memref.load %arg2[%c43] : memref<49xf32, #tpu.memory_space<smem>>
    %c6_90 = arith.constant 6 : index
    %c0_91 = arith.constant 0 : index
    %166 = vector.load %arg6[%c6_90, %c0_91] : memref<22x16xf32, #tpu.memory_space<vmem>>, vector<16x16xf32>
    %167 = vector.broadcast %165 : f32 to vector<16x16xf32>
    %168 = arith.mulf %167, %166 : vector<16x16xf32>
    %169 = arith.addf %149, %168 : vector<16x16xf32>
    %c0_92 = arith.constant 0 : index
    %c2_93 = arith.constant 2 : index
    %170 = vector.load %arg5[%c0_92, %c2_93] : memref<22x22xf32, #tpu.memory_space<vmem>>, vector<22x16xf32>
    %c0_94 = arith.constant 0 : index
    %c0_95 = arith.constant 0 : index
    %171 = vector.load %arg6[%c0_94, %c0_95] : memref<22x16xf32, #tpu.memory_space<vmem>>, vector<22x16xf32>
    tpu.vector_store %arg6[%c0_94, %c0_95], %170 {strides = array<i32>} : memref<22x16xf32, #tpu.memory_space<vmem>>, vector<22x16xf32>,
    %c2_96 = arith.constant 2 : index
    %172 = memref.load %arg2[%c2_96] : memref<49xf32, #tpu.memory_space<smem>>
    %c0_97 = arith.constant 0 : index
    %c0_98 = arith.constant 0 : index
    %173 = vector.load %arg6[%c0_97, %c0_98] : memref<22x16xf32, #tpu.memory_space<vmem>>, vector<16x16xf32>
    %174 = vector.broadcast %172 : f32 to vector<16x16xf32>
    %175 = arith.mulf %174, %173 : vector<16x16xf32>
    %176 = arith.addf %159, %175 : vector<16x16xf32>
    %c9_99 = arith.constant 9 : index
    %177 = memref.load %arg2[%c9_99] : memref<49xf32, #tpu.memory_space<smem>>
    %c1_100 = arith.constant 1 : index
    %c0_101 = arith.constant 0 : index
    %178 = vector.load %arg6[%c1_100, %c0_101] : memref<22x16xf32, #tpu.memory_space<vmem>>, vector<16x16xf32>
    %179 = vector.broadcast %177 : f32 to vector<16x16xf32>
    %180 = arith.mulf %179, %178 : vector<16x16xf32>
    %181 = arith.addf %164, %180 : vector<16x16xf32>
    %c16_102 = arith.constant 16 : index
    %182 = memref.load %arg2[%c16_102] : memref<49xf32, #tpu.memory_space<smem>>
    %c2_103 = arith.constant 2 : index
    %c0_104 = arith.constant 0 : index
    %183 = vector.load %arg6[%c2_103, %c0_104] : memref<22x16xf32, #tpu.memory_space<vmem>>, vector<16x16xf32>
    %184 = vector.broadcast %182 : f32 to vector<16x16xf32>
    %185 = arith.mulf %184, %183 : vector<16x16xf32>
    %186 = arith.addf %169, %185 : vector<16x16xf32>
    %c23 = arith.constant 23 : index
    %187 = memref.load %arg2[%c23] : memref<49xf32, #tpu.memory_space<smem>>
    %c3_105 = arith.constant 3 : index
    %c0_106 = arith.constant 0 : index
    %188 = vector.load %arg6[%c3_105, %c0_106] : memref<22x16xf32, #tpu.memory_space<vmem>>, vector<16x16xf32>
    %189 = vector.broadcast %187 : f32 to vector<16x16xf32>
    %190 = arith.mulf %189, %188 : vector<16x16xf32>
    %191 = arith.addf %154, %190 : vector<16x16xf32>
    %c30 = arith.constant 30 : index
    %192 = memref.load %arg2[%c30] : memref<49xf32, #tpu.memory_space<smem>>
    %c4_107 = arith.constant 4 : index
    %c0_108 = arith.constant 0 : index
    %193 = vector.load %arg6[%c4_107, %c0_108] : memref<22x16xf32, #tpu.memory_space<vmem>>, vector<16x16xf32>
    %194 = vector.broadcast %192 : f32 to vector<16x16xf32>
    %195 = arith.mulf %194, %193 : vector<16x16xf32>
    %196 = arith.addf %176, %195 : vector<16x16xf32>
    %c37 = arith.constant 37 : index
    %197 = memref.load %arg2[%c37] : memref<49xf32, #tpu.memory_space<smem>>
    %c5_109 = arith.constant 5 : index
    %c0_110 = arith.constant 0 : index
    %198 = vector.load %arg6[%c5_109, %c0_110] : memref<22x16xf32, #tpu.memory_space<vmem>>, vector<16x16xf32>
    %199 = vector.broadcast %197 : f32 to vector<16x16xf32>
    %200 = arith.mulf %199, %198 : vector<16x16xf32>
    %201 = arith.addf %181, %200 : vector<16x16xf32>
    %c44 = arith.constant 44 : index
    %202 = memref.load %arg2[%c44] : memref<49xf32, #tpu.memory_space<smem>>
    %c6_111 = arith.constant 6 : index
    %c0_112 = arith.constant 0 : index
    %203 = vector.load %arg6[%c6_111, %c0_112] : memref<22x16xf32, #tpu.memory_space<vmem>>, vector<16x16xf32>
    %204 = vector.broadcast %202 : f32 to vector<16x16xf32>
    %205 = arith.mulf %204, %203 : vector<16x16xf32>
    %206 = arith.addf %186, %205 : vector<16x16xf32>
    %c0_113 = arith.constant 0 : index
    %c3_114 = arith.constant 3 : index
    %207 = vector.load %arg5[%c0_113, %c3_114] : memref<22x22xf32, #tpu.memory_space<vmem>>, vector<22x16xf32>
    %c0_115 = arith.constant 0 : index
    %c0_116 = arith.constant 0 : index
    %208 = vector.load %arg6[%c0_115, %c0_116] : memref<22x16xf32, #tpu.memory_space<vmem>>, vector<22x16xf32>
    tpu.vector_store %arg6[%c0_115, %c0_116], %207 {strides = array<i32>} : memref<22x16xf32, #tpu.memory_space<vmem>>, vector<22x16xf32>,
    %c3_117 = arith.constant 3 : index
    %209 = memref.load %arg2[%c3_117] : memref<49xf32, #tpu.memory_space<smem>>
    %c0_118 = arith.constant 0 : index
    %c0_119 = arith.constant 0 : index
    %210 = vector.load %arg6[%c0_118, %c0_119] : memref<22x16xf32, #tpu.memory_space<vmem>>, vector<16x16xf32>
    %211 = vector.broadcast %209 : f32 to vector<16x16xf32>
    %212 = arith.mulf %211, %210 : vector<16x16xf32>
    %213 = arith.addf %196, %212 : vector<16x16xf32>
    %c10_120 = arith.constant 10 : index
    %214 = memref.load %arg2[%c10_120] : memref<49xf32, #tpu.memory_space<smem>>
    %c1_121 = arith.constant 1 : index
    %c0_122 = arith.constant 0 : index
    %215 = vector.load %arg6[%c1_121, %c0_122] : memref<22x16xf32, #tpu.memory_space<vmem>>, vector<16x16xf32>
    %216 = vector.broadcast %214 : f32 to vector<16x16xf32>
    %217 = arith.mulf %216, %215 : vector<16x16xf32>
    %218 = arith.addf %201, %217 : vector<16x16xf32>
    %c17_123 = arith.constant 17 : index
    %219 = memref.load %arg2[%c17_123] : memref<49xf32, #tpu.memory_space<smem>>
    %c2_124 = arith.constant 2 : index
    %c0_125 = arith.constant 0 : index
    %220 = vector.load %arg6[%c2_124, %c0_125] : memref<22x16xf32, #tpu.memory_space<vmem>>, vector<16x16xf32>
    %221 = vector.broadcast %219 : f32 to vector<16x16xf32>
    %222 = arith.mulf %221, %220 : vector<16x16xf32>
    %223 = arith.addf %206, %222 : vector<16x16xf32>
    %c24 = arith.constant 24 : index
    %224 = memref.load %arg2[%c24] : memref<49xf32, #tpu.memory_space<smem>>
    %c3_126 = arith.constant 3 : index
    %c0_127 = arith.constant 0 : index
    %225 = vector.load %arg6[%c3_126, %c0_127] : memref<22x16xf32, #tpu.memory_space<vmem>>, vector<16x16xf32>
    %226 = vector.broadcast %224 : f32 to vector<16x16xf32>
    %227 = arith.mulf %226, %225 : vector<16x16xf32>
    %228 = arith.addf %191, %227 : vector<16x16xf32>
    %c31 = arith.constant 31 : index
    %229 = memref.load %arg2[%c31] : memref<49xf32, #tpu.memory_space<smem>>
    %c4_128 = arith.constant 4 : index
    %c0_129 = arith.constant 0 : index
    %230 = vector.load %arg6[%c4_128, %c0_129] : memref<22x16xf32, #tpu.memory_space<vmem>>, vector<16x16xf32>
    %231 = vector.broadcast %229 : f32 to vector<16x16xf32>
    %232 = arith.mulf %231, %230 : vector<16x16xf32>
    %233 = arith.addf %213, %232 : vector<16x16xf32>
    %c38 = arith.constant 38 : index
    %234 = memref.load %arg2[%c38] : memref<49xf32, #tpu.memory_space<smem>>
    %c5_130 = arith.constant 5 : index
    %c0_131 = arith.constant 0 : index
    %235 = vector.load %arg6[%c5_130, %c0_131] : memref<22x16xf32, #tpu.memory_space<vmem>>, vector<16x16xf32>
    %236 = vector.broadcast %234 : f32 to vector<16x16xf32>
    %237 = arith.mulf %236, %235 : vector<16x16xf32>
    %238 = arith.addf %218, %237 : vector<16x16xf32>
    %c45 = arith.constant 45 : index
    %239 = memref.load %arg2[%c45] : memref<49xf32, #tpu.memory_space<smem>>
    %c6_132 = arith.constant 6 : index
    %c0_133 = arith.constant 0 : index
    %240 = vector.load %arg6[%c6_132, %c0_133] : memref<22x16xf32, #tpu.memory_space<vmem>>, vector<16x16xf32>
    %241 = vector.broadcast %239 : f32 to vector<16x16xf32>
    %242 = arith.mulf %241, %240 : vector<16x16xf32>
    %243 = arith.addf %223, %242 : vector<16x16xf32>
    %c0_134 = arith.constant 0 : index
    %c4_135 = arith.constant 4 : index
    %244 = vector.load %arg5[%c0_134, %c4_135] : memref<22x22xf32, #tpu.memory_space<vmem>>, vector<22x16xf32>
    %c0_136 = arith.constant 0 : index
    %c0_137 = arith.constant 0 : index
    %245 = vector.load %arg6[%c0_136, %c0_137] : memref<22x16xf32, #tpu.memory_space<vmem>>, vector<22x16xf32>
    tpu.vector_store %arg6[%c0_136, %c0_137], %244 {strides = array<i32>} : memref<22x16xf32, #tpu.memory_space<vmem>>, vector<22x16xf32>,
    %c4_138 = arith.constant 4 : index
    %246 = memref.load %arg2[%c4_138] : memref<49xf32, #tpu.memory_space<smem>>
    %c0_139 = arith.constant 0 : index
    %c0_140 = arith.constant 0 : index
    %247 = vector.load %arg6[%c0_139, %c0_140] : memref<22x16xf32, #tpu.memory_space<vmem>>, vector<16x16xf32>
    %248 = vector.broadcast %246 : f32 to vector<16x16xf32>
    %249 = arith.mulf %248, %247 : vector<16x16xf32>
    %250 = arith.addf %233, %249 : vector<16x16xf32>
    %c11_141 = arith.constant 11 : index
    %251 = memref.load %arg2[%c11_141] : memref<49xf32, #tpu.memory_space<smem>>
    %c1_142 = arith.constant 1 : index
    %c0_143 = arith.constant 0 : index
    %252 = vector.load %arg6[%c1_142, %c0_143] : memref<22x16xf32, #tpu.memory_space<vmem>>, vector<16x16xf32>
    %253 = vector.broadcast %251 : f32 to vector<16x16xf32>
    %254 = arith.mulf %253, %252 : vector<16x16xf32>
    %255 = arith.addf %238, %254 : vector<16x16xf32>
    %c18_144 = arith.constant 18 : index
    %256 = memref.load %arg2[%c18_144] : memref<49xf32, #tpu.memory_space<smem>>
    %c2_145 = arith.constant 2 : index
    %c0_146 = arith.constant 0 : index
    %257 = vector.load %arg6[%c2_145, %c0_146] : memref<22x16xf32, #tpu.memory_space<vmem>>, vector<16x16xf32>
    %258 = vector.broadcast %256 : f32 to vector<16x16xf32>
    %259 = arith.mulf %258, %257 : vector<16x16xf32>
    %260 = arith.addf %243, %259 : vector<16x16xf32>
    %c25 = arith.constant 25 : index
    %261 = memref.load %arg2[%c25] : memref<49xf32, #tpu.memory_space<smem>>
    %c3_147 = arith.constant 3 : index
    %c0_148 = arith.constant 0 : index
    %262 = vector.load %arg6[%c3_147, %c0_148] : memref<22x16xf32, #tpu.memory_space<vmem>>, vector<16x16xf32>
    %263 = vector.broadcast %261 : f32 to vector<16x16xf32>
    %264 = arith.mulf %263, %262 : vector<16x16xf32>
    %265 = arith.addf %228, %264 : vector<16x16xf32>
    %c32_149 = arith.constant 32 : index
    %266 = memref.load %arg2[%c32_149] : memref<49xf32, #tpu.memory_space<smem>>
    %c4_150 = arith.constant 4 : index
    %c0_151 = arith.constant 0 : index
    %267 = vector.load %arg6[%c4_150, %c0_151] : memref<22x16xf32, #tpu.memory_space<vmem>>, vector<16x16xf32>
    %268 = vector.broadcast %266 : f32 to vector<16x16xf32>
    %269 = arith.mulf %268, %267 : vector<16x16xf32>
    %270 = arith.addf %250, %269 : vector<16x16xf32>
    %c39 = arith.constant 39 : index
    %271 = memref.load %arg2[%c39] : memref<49xf32, #tpu.memory_space<smem>>
    %c5_152 = arith.constant 5 : index
    %c0_153 = arith.constant 0 : index
    %272 = vector.load %arg6[%c5_152, %c0_153] : memref<22x16xf32, #tpu.memory_space<vmem>>, vector<16x16xf32>
    %273 = vector.broadcast %271 : f32 to vector<16x16xf32>
    %274 = arith.mulf %273, %272 : vector<16x16xf32>
    %275 = arith.addf %255, %274 : vector<16x16xf32>
    %c46 = arith.constant 46 : index
    %276 = memref.load %arg2[%c46] : memref<49xf32, #tpu.memory_space<smem>>
    %c6_154 = arith.constant 6 : index
    %c0_155 = arith.constant 0 : index
    %277 = vector.load %arg6[%c6_154, %c0_155] : memref<22x16xf32, #tpu.memory_space<vmem>>, vector<16x16xf32>
    %278 = vector.broadcast %276 : f32 to vector<16x16xf32>
    %279 = arith.mulf %278, %277 : vector<16x16xf32>
    %280 = arith.addf %260, %279 : vector<16x16xf32>
    %c0_156 = arith.constant 0 : index
    %c5_157 = arith.constant 5 : index
    %281 = vector.load %arg5[%c0_156, %c5_157] : memref<22x22xf32, #tpu.memory_space<vmem>>, vector<22x16xf32>
    %c0_158 = arith.constant 0 : index
    %c0_159 = arith.constant 0 : index
    %282 = vector.load %arg6[%c0_158, %c0_159] : memref<22x16xf32, #tpu.memory_space<vmem>>, vector<22x16xf32>
    tpu.vector_store %arg6[%c0_158, %c0_159], %281 {strides = array<i32>} : memref<22x16xf32, #tpu.memory_space<vmem>>, vector<22x16xf32>,
    %c5_160 = arith.constant 5 : index
    %283 = memref.load %arg2[%c5_160] : memref<49xf32, #tpu.memory_space<smem>>
    %c0_161 = arith.constant 0 : index
    %c0_162 = arith.constant 0 : index
    %284 = vector.load %arg6[%c0_161, %c0_162] : memref<22x16xf32, #tpu.memory_space<vmem>>, vector<16x16xf32>
    %285 = vector.broadcast %283 : f32 to vector<16x16xf32>
    %286 = arith.mulf %285, %284 : vector<16x16xf32>
    %287 = arith.addf %270, %286 : vector<16x16xf32>
    %c12_163 = arith.constant 12 : index
    %288 = memref.load %arg2[%c12_163] : memref<49xf32, #tpu.memory_space<smem>>
    %c1_164 = arith.constant 1 : index
    %c0_165 = arith.constant 0 : index
    %289 = vector.load %arg6[%c1_164, %c0_165] : memref<22x16xf32, #tpu.memory_space<vmem>>, vector<16x16xf32>
    %290 = vector.broadcast %288 : f32 to vector<16x16xf32>
    %291 = arith.mulf %290, %289 : vector<16x16xf32>
    %292 = arith.addf %275, %291 : vector<16x16xf32>
    %c19_166 = arith.constant 19 : index
    %293 = memref.load %arg2[%c19_166] : memref<49xf32, #tpu.memory_space<smem>>
    %c2_167 = arith.constant 2 : index
    %c0_168 = arith.constant 0 : index
    %294 = vector.load %arg6[%c2_167, %c0_168] : memref<22x16xf32, #tpu.memory_space<vmem>>, vector<16x16xf32>
    %295 = vector.broadcast %293 : f32 to vector<16x16xf32>
    %296 = arith.mulf %295, %294 : vector<16x16xf32>
    %297 = arith.addf %280, %296 : vector<16x16xf32>
    %c26 = arith.constant 26 : index
    %298 = memref.load %arg2[%c26] : memref<49xf32, #tpu.memory_space<smem>>
    %c3_169 = arith.constant 3 : index
    %c0_170 = arith.constant 0 : index
    %299 = vector.load %arg6[%c3_169, %c0_170] : memref<22x16xf32, #tpu.memory_space<vmem>>, vector<16x16xf32>
    %300 = vector.broadcast %298 : f32 to vector<16x16xf32>
    %301 = arith.mulf %300, %299 : vector<16x16xf32>
    %302 = arith.addf %265, %301 : vector<16x16xf32>
    %c33 = arith.constant 33 : index
    %303 = memref.load %arg2[%c33] : memref<49xf32, #tpu.memory_space<smem>>
    %c4_171 = arith.constant 4 : index
    %c0_172 = arith.constant 0 : index
    %304 = vector.load %arg6[%c4_171, %c0_172] : memref<22x16xf32, #tpu.memory_space<vmem>>, vector<16x16xf32>
    %305 = vector.broadcast %303 : f32 to vector<16x16xf32>
    %306 = arith.mulf %305, %304 : vector<16x16xf32>
    %307 = arith.addf %287, %306 : vector<16x16xf32>
    %c40 = arith.constant 40 : index
    %308 = memref.load %arg2[%c40] : memref<49xf32, #tpu.memory_space<smem>>
    %c5_173 = arith.constant 5 : index
    %c0_174 = arith.constant 0 : index
    %309 = vector.load %arg6[%c5_173, %c0_174] : memref<22x16xf32, #tpu.memory_space<vmem>>, vector<16x16xf32>
    %310 = vector.broadcast %308 : f32 to vector<16x16xf32>
    %311 = arith.mulf %310, %309 : vector<16x16xf32>
    %312 = arith.addf %292, %311 : vector<16x16xf32>
    %c47 = arith.constant 47 : index
    %313 = memref.load %arg2[%c47] : memref<49xf32, #tpu.memory_space<smem>>
    %c6_175 = arith.constant 6 : index
    %c0_176 = arith.constant 0 : index
    %314 = vector.load %arg6[%c6_175, %c0_176] : memref<22x16xf32, #tpu.memory_space<vmem>>, vector<16x16xf32>
    %315 = vector.broadcast %313 : f32 to vector<16x16xf32>
    %316 = arith.mulf %315, %314 : vector<16x16xf32>
    %317 = arith.addf %297, %316 : vector<16x16xf32>
    %c0_177 = arith.constant 0 : index
    %c6_178 = arith.constant 6 : index
    %318 = vector.load %arg5[%c0_177, %c6_178] : memref<22x22xf32, #tpu.memory_space<vmem>>, vector<22x16xf32>
    %c0_179 = arith.constant 0 : index
    %c0_180 = arith.constant 0 : index
    %319 = vector.load %arg6[%c0_179, %c0_180] : memref<22x16xf32, #tpu.memory_space<vmem>>, vector<22x16xf32>
    tpu.vector_store %arg6[%c0_179, %c0_180], %318 {strides = array<i32>} : memref<22x16xf32, #tpu.memory_space<vmem>>, vector<22x16xf32>,
    %c6_181 = arith.constant 6 : index
    %320 = memref.load %arg2[%c6_181] : memref<49xf32, #tpu.memory_space<smem>>
    %c0_182 = arith.constant 0 : index
    %c0_183 = arith.constant 0 : index
    %321 = vector.load %arg6[%c0_182, %c0_183] : memref<22x16xf32, #tpu.memory_space<vmem>>, vector<16x16xf32>
    %322 = vector.broadcast %320 : f32 to vector<16x16xf32>
    %323 = arith.mulf %322, %321 : vector<16x16xf32>
    %324 = arith.addf %307, %323 : vector<16x16xf32>
    %c13_184 = arith.constant 13 : index
    %325 = memref.load %arg2[%c13_184] : memref<49xf32, #tpu.memory_space<smem>>
    %c1_185 = arith.constant 1 : index
    %c0_186 = arith.constant 0 : index
    %326 = vector.load %arg6[%c1_185, %c0_186] : memref<22x16xf32, #tpu.memory_space<vmem>>, vector<16x16xf32>
    %327 = vector.broadcast %325 : f32 to vector<16x16xf32>
    %328 = arith.mulf %327, %326 : vector<16x16xf32>
    %329 = arith.addf %312, %328 : vector<16x16xf32>
    %c20 = arith.constant 20 : index
    %330 = memref.load %arg2[%c20] : memref<49xf32, #tpu.memory_space<smem>>
    %c2_187 = arith.constant 2 : index
    %c0_188 = arith.constant 0 : index
    %331 = vector.load %arg6[%c2_187, %c0_188] : memref<22x16xf32, #tpu.memory_space<vmem>>, vector<16x16xf32>
    %332 = vector.broadcast %330 : f32 to vector<16x16xf32>
    %333 = arith.mulf %332, %331 : vector<16x16xf32>
    %334 = arith.addf %317, %333 : vector<16x16xf32>
    %c27 = arith.constant 27 : index
    %335 = memref.load %arg2[%c27] : memref<49xf32, #tpu.memory_space<smem>>
    %c3_189 = arith.constant 3 : index
    %c0_190 = arith.constant 0 : index
    %336 = vector.load %arg6[%c3_189, %c0_190] : memref<22x16xf32, #tpu.memory_space<vmem>>, vector<16x16xf32>
    %337 = vector.broadcast %335 : f32 to vector<16x16xf32>
    %338 = arith.mulf %337, %336 : vector<16x16xf32>
    %339 = arith.addf %302, %338 : vector<16x16xf32>
    %c34 = arith.constant 34 : index
    %340 = memref.load %arg2[%c34] : memref<49xf32, #tpu.memory_space<smem>>
    %c4_191 = arith.constant 4 : index
    %c0_192 = arith.constant 0 : index
    %341 = vector.load %arg6[%c4_191, %c0_192] : memref<22x16xf32, #tpu.memory_space<vmem>>, vector<16x16xf32>
    %342 = vector.broadcast %340 : f32 to vector<16x16xf32>
    %343 = arith.mulf %342, %341 : vector<16x16xf32>
    %344 = arith.addf %324, %343 : vector<16x16xf32>
    %c41 = arith.constant 41 : index
    %345 = memref.load %arg2[%c41] : memref<49xf32, #tpu.memory_space<smem>>
    %c5_193 = arith.constant 5 : index
    %c0_194 = arith.constant 0 : index
    %346 = vector.load %arg6[%c5_193, %c0_194] : memref<22x16xf32, #tpu.memory_space<vmem>>, vector<16x16xf32>
    %347 = vector.broadcast %345 : f32 to vector<16x16xf32>
    %348 = arith.mulf %347, %346 : vector<16x16xf32>
    %349 = arith.addf %329, %348 : vector<16x16xf32>
    %c48_195 = arith.constant 48 : index
    %350 = memref.load %arg2[%c48_195] : memref<49xf32, #tpu.memory_space<smem>>
    %c6_196 = arith.constant 6 : index
    %c0_197 = arith.constant 0 : index
    %351 = vector.load %arg6[%c6_196, %c0_197] : memref<22x16xf32, #tpu.memory_space<vmem>>, vector<16x16xf32>
    %352 = vector.broadcast %350 : f32 to vector<16x16xf32>
    %353 = arith.mulf %352, %351 : vector<16x16xf32>
    %354 = arith.addf %334, %353 : vector<16x16xf32>
    %355 = arith.addf %344, %349 : vector<16x16xf32>
    %356 = arith.addf %355, %354 : vector<16x16xf32>
    %357 = arith.addf %356, %339 : vector<16x16xf32>
    %358 = vector.broadcast %91 : f32 to vector<16x16xf32>
    %359 = arith.addf %357, %358 : vector<16x16xf32>
    %360 = arith.negf %359 : vector<16x16xf32>
    %361 = math.exp %360 : vector<16x16xf32>
    %cst_198 = arith.constant 1.000000e+00 : f32
    %362 = vector.broadcast %cst_198 : f32 to vector<16x16xf32>
    %363 = arith.addf %362, %361 : vector<16x16xf32>
    %364 = arith.divf %362, %363 : vector<16x16xf32>
    %c3_199 = arith.constant 3 : index
    %c3_200 = arith.constant 3 : index
    %365 = vector.load %arg5[%c3_199, %c3_200] : memref<22x22xf32, #tpu.memory_space<vmem>>, vector<16x16xf32>
    tpu.vector_store %arg5[%c3_199, %c3_200], %364 {strides = array<i32>} : memref<22x22xf32, #tpu.memory_space<vmem>>, vector<16x16xf32>,
    %c3_201 = arith.constant 3 : index
    %c3_202 = arith.constant 3 : index
    %366 = vector.load %arg5[%c3_201, %c3_202] : memref<22x22xf32, #tpu.memory_space<vmem>>, vector<1x16xf32>
    %367 = vector.shape_cast %366 : vector<1x16xf32> to vector<16xf32>
    %c0_203 = arith.constant 0 : index
    %c0_204 = arith.constant 0 : index
    %368 = vector.load %arg7[%c0_203, %c0_204] : memref<1x256xf32, #tpu.memory_space<vmem>>, vector<1x16xf32>
    %369 = vector.shape_cast %368 : vector<1x16xf32> to vector<16xf32>
    %370 = vector.shape_cast %367 : vector<16xf32> to vector<1x16xf32>
    tpu.vector_store %arg7[%c0_203, %c0_204], %370 {strides = array<i32>} : memref<1x256xf32, #tpu.memory_space<vmem>>, vector<1x16xf32>,
    %c4_205 = arith.constant 4 : index
    %c3_206 = arith.constant 3 : index
    %371 = vector.load %arg5[%c4_205, %c3_206] : memref<22x22xf32, #tpu.memory_space<vmem>>, vector<1x16xf32>
    %372 = vector.shape_cast %371 : vector<1x16xf32> to vector<16xf32>
    %c0_207 = arith.constant 0 : index
    %c16_208 = arith.constant 16 : index
    %373 = vector.load %arg7[%c0_207, %c16_208] : memref<1x256xf32, #tpu.memory_space<vmem>>, vector<1x16xf32>
    %374 = vector.shape_cast %373 : vector<1x16xf32> to vector<16xf32>
    %375 = vector.shape_cast %372 : vector<16xf32> to vector<1x16xf32>
    tpu.vector_store %arg7[%c0_207, %c16_208], %375 {strides = array<i32>} : memref<1x256xf32, #tpu.memory_space<vmem>>, vector<1x16xf32>,
    %c5_209 = arith.constant 5 : index
    %c3_210 = arith.constant 3 : index
    %376 = vector.load %arg5[%c5_209, %c3_210] : memref<22x22xf32, #tpu.memory_space<vmem>>, vector<1x16xf32>
    %377 = vector.shape_cast %376 : vector<1x16xf32> to vector<16xf32>
    %c0_211 = arith.constant 0 : index
    %c32_212 = arith.constant 32 : index
    %378 = vector.load %arg7[%c0_211, %c32_212] : memref<1x256xf32, #tpu.memory_space<vmem>>, vector<1x16xf32>
    %379 = vector.shape_cast %378 : vector<1x16xf32> to vector<16xf32>
    %380 = vector.shape_cast %377 : vector<16xf32> to vector<1x16xf32>
    tpu.vector_store %arg7[%c0_211, %c32_212], %380 {strides = array<i32>} : memref<1x256xf32, #tpu.memory_space<vmem>>, vector<1x16xf32>,
    %c6_213 = arith.constant 6 : index
    %c3_214 = arith.constant 3 : index
    %381 = vector.load %arg5[%c6_213, %c3_214] : memref<22x22xf32, #tpu.memory_space<vmem>>, vector<1x16xf32>
    %382 = vector.shape_cast %381 : vector<1x16xf32> to vector<16xf32>
    %c0_215 = arith.constant 0 : index
    %c48_216 = arith.constant 48 : index
    %383 = vector.load %arg7[%c0_215, %c48_216] : memref<1x256xf32, #tpu.memory_space<vmem>>, vector<1x16xf32>
    %384 = vector.shape_cast %383 : vector<1x16xf32> to vector<16xf32>
    %385 = vector.shape_cast %382 : vector<16xf32> to vector<1x16xf32>
    tpu.vector_store %arg7[%c0_215, %c48_216], %385 {strides = array<i32>} : memref<1x256xf32, #tpu.memory_space<vmem>>, vector<1x16xf32>,
    %c7_217 = arith.constant 7 : index
    %c3_218 = arith.constant 3 : index
    %386 = vector.load %arg5[%c7_217, %c3_218] : memref<22x22xf32, #tpu.memory_space<vmem>>, vector<1x16xf32>
    %387 = vector.shape_cast %386 : vector<1x16xf32> to vector<16xf32>
    %c0_219 = arith.constant 0 : index
    %c64_220 = arith.constant 64 : index
    %388 = vector.load %arg7[%c0_219, %c64_220] : memref<1x256xf32, #tpu.memory_space<vmem>>, vector<1x16xf32>
    %389 = vector.shape_cast %388 : vector<1x16xf32> to vector<16xf32>
    %390 = vector.shape_cast %387 : vector<16xf32> to vector<1x16xf32>
    tpu.vector_store %arg7[%c0_219, %c64_220], %390 {strides = array<i32>} : memref<1x256xf32, #tpu.memory_space<vmem>>, vector<1x16xf32>,
    %c8_221 = arith.constant 8 : index
    %c3_222 = arith.constant 3 : index
    %391 = vector.load %arg5[%c8_221, %c3_222] : memref<22x22xf32, #tpu.memory_space<vmem>>, vector<1x16xf32>
    %392 = vector.shape_cast %391 : vector<1x16xf32> to vector<16xf32>
    %c0_223 = arith.constant 0 : index
    %c80_224 = arith.constant 80 : index
    %393 = vector.load %arg7[%c0_223, %c80_224] : memref<1x256xf32, #tpu.memory_space<vmem>>, vector<1x16xf32>
    %394 = vector.shape_cast %393 : vector<1x16xf32> to vector<16xf32>
    %395 = vector.shape_cast %392 : vector<16xf32> to vector<1x16xf32>
    tpu.vector_store %arg7[%c0_223, %c80_224], %395 {strides = array<i32>} : memref<1x256xf32, #tpu.memory_space<vmem>>, vector<1x16xf32>,
    %c9_225 = arith.constant 9 : index
    %c3_226 = arith.constant 3 : index
    %396 = vector.load %arg5[%c9_225, %c3_226] : memref<22x22xf32, #tpu.memory_space<vmem>>, vector<1x16xf32>
    %397 = vector.shape_cast %396 : vector<1x16xf32> to vector<16xf32>
    %c0_227 = arith.constant 0 : index
    %c96_228 = arith.constant 96 : index
    %398 = vector.load %arg7[%c0_227, %c96_228] : memref<1x256xf32, #tpu.memory_space<vmem>>, vector<1x16xf32>
    %399 = vector.shape_cast %398 : vector<1x16xf32> to vector<16xf32>
    %400 = vector.shape_cast %397 : vector<16xf32> to vector<1x16xf32>
    tpu.vector_store %arg7[%c0_227, %c96_228], %400 {strides = array<i32>} : memref<1x256xf32, #tpu.memory_space<vmem>>, vector<1x16xf32>,
    %c10_229 = arith.constant 10 : index
    %c3_230 = arith.constant 3 : index
    %401 = vector.load %arg5[%c10_229, %c3_230] : memref<22x22xf32, #tpu.memory_space<vmem>>, vector<1x16xf32>
    %402 = vector.shape_cast %401 : vector<1x16xf32> to vector<16xf32>
    %c0_231 = arith.constant 0 : index
    %c112_232 = arith.constant 112 : index
    %403 = vector.load %arg7[%c0_231, %c112_232] : memref<1x256xf32, #tpu.memory_space<vmem>>, vector<1x16xf32>
    %404 = vector.shape_cast %403 : vector<1x16xf32> to vector<16xf32>
    %405 = vector.shape_cast %402 : vector<16xf32> to vector<1x16xf32>
    tpu.vector_store %arg7[%c0_231, %c112_232], %405 {strides = array<i32>} : memref<1x256xf32, #tpu.memory_space<vmem>>, vector<1x16xf32>,
    %c11_233 = arith.constant 11 : index
    %c3_234 = arith.constant 3 : index
    %406 = vector.load %arg5[%c11_233, %c3_234] : memref<22x22xf32, #tpu.memory_space<vmem>>, vector<1x16xf32>
    %407 = vector.shape_cast %406 : vector<1x16xf32> to vector<16xf32>
    %c0_235 = arith.constant 0 : index
    %c128_236 = arith.constant 128 : index
    %408 = vector.load %arg7[%c0_235, %c128_236] : memref<1x256xf32, #tpu.memory_space<vmem>>, vector<1x16xf32>
    %409 = vector.shape_cast %408 : vector<1x16xf32> to vector<16xf32>
    %410 = vector.shape_cast %407 : vector<16xf32> to vector<1x16xf32>
    tpu.vector_store %arg7[%c0_235, %c128_236], %410 {strides = array<i32>} : memref<1x256xf32, #tpu.memory_space<vmem>>, vector<1x16xf32>,
    %c12_237 = arith.constant 12 : index
    %c3_238 = arith.constant 3 : index
    %411 = vector.load %arg5[%c12_237, %c3_238] : memref<22x22xf32, #tpu.memory_space<vmem>>, vector<1x16xf32>
    %412 = vector.shape_cast %411 : vector<1x16xf32> to vector<16xf32>
    %c0_239 = arith.constant 0 : index
    %c144_240 = arith.constant 144 : index
    %413 = vector.load %arg7[%c0_239, %c144_240] : memref<1x256xf32, #tpu.memory_space<vmem>>, vector<1x16xf32>
    %414 = vector.shape_cast %413 : vector<1x16xf32> to vector<16xf32>
    %415 = vector.shape_cast %412 : vector<16xf32> to vector<1x16xf32>
    tpu.vector_store %arg7[%c0_239, %c144_240], %415 {strides = array<i32>} : memref<1x256xf32, #tpu.memory_space<vmem>>, vector<1x16xf32>,
    %c13_241 = arith.constant 13 : index
    %c3_242 = arith.constant 3 : index
    %416 = vector.load %arg5[%c13_241, %c3_242] : memref<22x22xf32, #tpu.memory_space<vmem>>, vector<1x16xf32>
    %417 = vector.shape_cast %416 : vector<1x16xf32> to vector<16xf32>
    %c0_243 = arith.constant 0 : index
    %c160_244 = arith.constant 160 : index
    %418 = vector.load %arg7[%c0_243, %c160_244] : memref<1x256xf32, #tpu.memory_space<vmem>>, vector<1x16xf32>
    %419 = vector.shape_cast %418 : vector<1x16xf32> to vector<16xf32>
    %420 = vector.shape_cast %417 : vector<16xf32> to vector<1x16xf32>
    tpu.vector_store %arg7[%c0_243, %c160_244], %420 {strides = array<i32>} : memref<1x256xf32, #tpu.memory_space<vmem>>, vector<1x16xf32>,
    %c14_245 = arith.constant 14 : index
    %c3_246 = arith.constant 3 : index
    %421 = vector.load %arg5[%c14_245, %c3_246] : memref<22x22xf32, #tpu.memory_space<vmem>>, vector<1x16xf32>
    %422 = vector.shape_cast %421 : vector<1x16xf32> to vector<16xf32>
    %c0_247 = arith.constant 0 : index
    %c176_248 = arith.constant 176 : index
    %423 = vector.load %arg7[%c0_247, %c176_248] : memref<1x256xf32, #tpu.memory_space<vmem>>, vector<1x16xf32>
    %424 = vector.shape_cast %423 : vector<1x16xf32> to vector<16xf32>
    %425 = vector.shape_cast %422 : vector<16xf32> to vector<1x16xf32>
    tpu.vector_store %arg7[%c0_247, %c176_248], %425 {strides = array<i32>} : memref<1x256xf32, #tpu.memory_space<vmem>>, vector<1x16xf32>,
    %c15_249 = arith.constant 15 : index
    %c3_250 = arith.constant 3 : index
    %426 = vector.load %arg5[%c15_249, %c3_250] : memref<22x22xf32, #tpu.memory_space<vmem>>, vector<1x16xf32>
    %427 = vector.shape_cast %426 : vector<1x16xf32> to vector<16xf32>
    %c0_251 = arith.constant 0 : index
    %c192_252 = arith.constant 192 : index
    %428 = vector.load %arg7[%c0_251, %c192_252] : memref<1x256xf32, #tpu.memory_space<vmem>>, vector<1x16xf32>
    %429 = vector.shape_cast %428 : vector<1x16xf32> to vector<16xf32>
    %430 = vector.shape_cast %427 : vector<16xf32> to vector<1x16xf32>
    tpu.vector_store %arg7[%c0_251, %c192_252], %430 {strides = array<i32>} : memref<1x256xf32, #tpu.memory_space<vmem>>, vector<1x16xf32>,
    %c16_253 = arith.constant 16 : index
    %c3_254 = arith.constant 3 : index
    %431 = vector.load %arg5[%c16_253, %c3_254] : memref<22x22xf32, #tpu.memory_space<vmem>>, vector<1x16xf32>
    %432 = vector.shape_cast %431 : vector<1x16xf32> to vector<16xf32>
    %c0_255 = arith.constant 0 : index
    %c208_256 = arith.constant 208 : index
    %433 = vector.load %arg7[%c0_255, %c208_256] : memref<1x256xf32, #tpu.memory_space<vmem>>, vector<1x16xf32>
    %434 = vector.shape_cast %433 : vector<1x16xf32> to vector<16xf32>
    %435 = vector.shape_cast %432 : vector<16xf32> to vector<1x16xf32>
    tpu.vector_store %arg7[%c0_255, %c208_256], %435 {strides = array<i32>} : memref<1x256xf32, #tpu.memory_space<vmem>>, vector<1x16xf32>,
    %c17_257 = arith.constant 17 : index
    %c3_258 = arith.constant 3 : index
    %436 = vector.load %arg5[%c17_257, %c3_258] : memref<22x22xf32, #tpu.memory_space<vmem>>, vector<1x16xf32>
    %437 = vector.shape_cast %436 : vector<1x16xf32> to vector<16xf32>
    %c0_259 = arith.constant 0 : index
    %c224_260 = arith.constant 224 : index
    %438 = vector.load %arg7[%c0_259, %c224_260] : memref<1x256xf32, #tpu.memory_space<vmem>>, vector<1x16xf32>
    %439 = vector.shape_cast %438 : vector<1x16xf32> to vector<16xf32>
    %440 = vector.shape_cast %437 : vector<16xf32> to vector<1x16xf32>
    tpu.vector_store %arg7[%c0_259, %c224_260], %440 {strides = array<i32>} : memref<1x256xf32, #tpu.memory_space<vmem>>, vector<1x16xf32>,
    %c18_261 = arith.constant 18 : index
    %c3_262 = arith.constant 3 : index
    %441 = vector.load %arg5[%c18_261, %c3_262] : memref<22x22xf32, #tpu.memory_space<vmem>>, vector<1x16xf32>
    %442 = vector.shape_cast %441 : vector<1x16xf32> to vector<16xf32>
    %c0_263 = arith.constant 0 : index
    %c240_264 = arith.constant 240 : index
    %443 = vector.load %arg7[%c0_263, %c240_264] : memref<1x256xf32, #tpu.memory_space<vmem>>, vector<1x16xf32>
    %444 = vector.shape_cast %443 : vector<1x16xf32> to vector<16xf32>
    %445 = vector.shape_cast %442 : vector<16xf32> to vector<1x16xf32>
    tpu.vector_store %arg7[%c0_263, %c240_264], %445 {strides = array<i32>} : memref<1x256xf32, #tpu.memory_space<vmem>>, vector<1x16xf32>,
    %c0_265 = arith.constant 0 : index
    %c0_266 = arith.constant 0 : index
    %c0_267 = arith.constant 0 : index
    %446 = vector.load %arg1[%c0_265, %c0_266, %c0_267] : memref<1x4x256xf32, #tpu.memory_space<vmem>>, vector<1x4x256xf32>
    %447 = vector.shape_cast %446 : vector<1x4x256xf32> to vector<4x256xf32>
    %c0_268 = arith.constant 0 : index
    %c0_269 = arith.constant 0 : index
    %448 = vector.load %arg7[%c0_268, %c0_269] : memref<1x256xf32, #tpu.memory_space<vmem>>, vector<1x256xf32>
    %449 = vector.broadcast %448 : vector<1x256xf32> to vector<4x256xf32>
    %450 = arith.mulf %447, %449 : vector<4x256xf32>
    %c0_270 = arith.constant 0 : index
    %c0_271 = arith.constant 0 : index
    %c0_272 = arith.constant 0 : index
    %451 = vector.load %arg4[%c0_270, %c0_271, %c0_272] : memref<1x4x256xf32, #tpu.memory_space<vmem>>, vector<1x4x256xf32>
    %452 = vector.shape_cast %451 : vector<1x4x256xf32> to vector<4x256xf32>
    %453 = vector.shape_cast %450 : vector<4x256xf32> to vector<1x4x256xf32>
    tpu.vector_store %arg4[%c0_270, %c0_271, %c0_272], %453 {strides = array<i32>} : memref<1x4x256xf32, #tpu.memory_space<vmem>>, vector<1x4x256xf32>,
    return
  }
  func.func @transform_0(%arg0: i32) -> (i32, i32, i32) {
    %c0_i32 = arith.constant 0 : i32
    %c0_i32_0 = arith.constant 0 : i32
    %c0_i32_1 = arith.constant 0 : i32
    return %arg0, %c0_i32, %c0_i32_0 : i32, i32, i32
  }
  func.func @transform_1(%arg0: i32) -> i32 {
    %c0_i32 = arith.constant 0 : i32
    %c0_i32_0 = arith.constant 0 : i32
    return %c0_i32 : i32
  }
  func.func @transform_2(%arg0: i32) -> i32 {
    %c0_i32 = arith.constant 0 : i32
    %c0_i32_0 = arith.constant 0 : i32
    return %c0_i32 : i32
  }
  func.func @transform_3(%arg0: i32) -> (i32, i32, i32) {
    %c0_i32 = arith.constant 0 : i32
    %c0_i32_0 = arith.constant 0 : i32
    %c0_i32_1 = arith.constant 0 : i32
    return %arg0, %c0_i32, %c0_i32_0 : i32, i32, i32
  }
}

</mosaic_0001>

<llo_original>
// kernel: spatial_gate.1
$region0: #{spatial_gate.1}
  #allocation0 [shape = 'u32[]', space=smem, size = 0x4, offset = 0x4, fixed_abs, tag = 'smem constant byte address 0x4 - core index']
  #allocation1 [shape = 'u32[144,128]{1,0:T(1,128)}', space=vmem, size = 0x12000, scoped, tag = 'internal scratch']
  #allocation2 [shape = 'f32[22,22]{1,0:T(8,128)}', space=vmem, size = 0x3000, scoped, tag = 'scratch operand']
  #allocation3 [shape = 'f32[22,16]{1,0:T(8,128)}', space=vmem, size = 0x3000, scoped, tag = 'scratch operand']
  #allocation4 [shape = 'f32[1,256]{1,0:T(1,128)}', space=vmem, size = 0x400, scoped, tag = 'scratch operand']
  #allocation5 [shape = 'f32[1]{0:T(128)S(6)}', space=smem, size = 0x200, scoped, tag = 'scoped memory for spatial_gate.1']
  %s0 = inlined_call_operand.vmem [shape: f32[2,4,256], index: 0, kind: input, shape index: {}]
  %s1 = inlined_call_operand.vmem [shape: f32[49], index: 1, kind: input, shape index: {}]
  %s2 = inlined_call_operand.<no memory space> [shape: f32[1], index: 2, kind: input, shape index: {}]
  %s3 = inlined_call_operand.vmem [shape: f32[2,4,256], index: 3, kind: output, shape index: {}]
  %s4 = sld [smem:[#allocation0]]
  $region49: #{spatial_gate.1} parent=0
    _
  %s6 = ssub.s32 1, %s4
  %s7 = scalar_select 0, %s6, %s4
  %8 = sst [smem:[#allocation5]] %s2
  $region1: #{spatial_gate.1} parent=0
    #allocation6 [shape = 'u8[512]{0}', space=smem, size = 0x200, scoped, tag = 'input window, operand 1, single buffered']
    #allocation7 [shape = 's32[2]{0}', space=sflag, size = 0x8, scoped, tag = 'scoped memory for spatial_gate.1']
    %9 = vsyncpa [#allocation7], 0
    loop: start=0, step=1, limit=4
    $region2: #{spatial_gate.1} parent=1 // loop_pre_header
      _
    $region3: #{spatial_gate.1} parent=1 // loop_header
      %s11 = sphi 0, %s15
      %p12 = scmp.ge.s32.totalorder %s11, 4
      %s21 = sphi 0, %s23
      %s24 = sphi 0, %s21
      %s25 = sphi 0, %s24
      %s41 = sphi 0, %s25
      %s45 = sphi 0, %s45
      %s47 = sphi 0, %s45
      %s48 = sphi 0, %s47
      %s62 = sphi 0, %s48
      %s66 = sphi 0, %s66
      %s68 = sphi 0, %s66
      %s69 = sphi 0, %s68
      %s83 = sphi 0, %s69
      %s89 = sphi 0, %s91
      %s92 = sphi 0, %s89
      %s93 = sphi 0, %s92
      %s109 = sphi 0, %s93
    $region4: #{spatial_gate.1} parent=1 // loop_header_branch
      %14 = sbr.rel (%p12) target = $region8
    $region5: #{spatial_gate.1} parent=1 // loop_body
      %s16 = ssub.s32 %s11, 1
      %s17 = ssub.s32 %s11, 2
      %s18 = sadd.s32 %s11, 1
      %s19 = ssub.s32 %s11, %s18
      %p20 = scmp.eq.s32.totalorder %s19, 0
      %s22 = sadd.s32 %s21, 1
      %s23 = scalar_select %p20, %s21, %s22
      %p26 = pneg %p20
      %p27 = scmp.eq.s32.totalorder %s11, 1
      %p28 = por %p26, %p27
      %p29 = scmp.ne.s32.totalorder %s21, %s24
      %p30 = scmp.eq.s32.totalorder %s11, 0
      %p31 = por %p29, %p30
      %p32 = scmp.ne.s32.totalorder %s21, %s24
      %p33 = scmp.eq.s32.totalorder %s16, 1
      %p34 = por %p32, %p33
      %p35 = scmp.ne.s32.totalorder %s24, %s25
      %p36 = scmp.eq.s32.totalorder %s16, 0
      %p37 = por %p35, %p36
      %p38 = scmp.ne.s32.totalorder %s24, %s25
      %p39 = scmp.eq.s32.totalorder %s17, 1
      %p40 = por %p38, %p39
      %p42 = scmp.ne.s32.totalorder %s25, %s41
      %p43 = scmp.eq.s32.totalorder %s17, 0
      %p44 = por %p42, %p43
      %s46 = sadd.s32 %s45, 1
      %p49 = scmp.eq.s32.totalorder %s11, 1
      %p50 = scmp.ne.s32.totalorder %s45, %s47
      %p51 = scmp.eq.s32.totalorder %s11, 0
      %p52 = por %p50, %p51
      %p53 = scmp.ne.s32.totalorder %s45, %s47
      %p54 = scmp.eq.s32.totalorder %s16, 1
      %p55 = por %p53, %p54
      %p56 = scmp.ne.s32.totalorder %s47, %s48
      %p57 = scmp.eq.s32.totalorder %s16, 0
      %p58 = por %p56, %p57
      %p59 = scmp.ne.s32.totalorder %s47, %s48
      %p60 = scmp.eq.s32.totalorder %s17, 1
      %p61 = por %p59, %p60
      %p63 = scmp.ne.s32.totalorder %s48, %s62
      %p64 = scmp.eq.s32.totalorder %s17, 0
      %p65 = por %p63, %p64
      %s67 = sadd.s32 %s66, 1
      %p70 = scmp.eq.s32.totalorder %s11, 1
      %p71 = scmp.ne.s32.totalorder %s66, %s68
      %p72 = scmp.eq.s32.totalorder %s11, 0
      %p73 = por %p71, %p72
      %p74 = scmp.ne.s32.totalorder %s66, %s68
      %p75 = scmp.eq.s32.totalorder %s16, 1
      %p76 = por %p74, %p75
      %p77 = scmp.ne.s32.totalorder %s68, %s69
      %p78 = scmp.eq.s32.totalorder %s16, 0
      %p79 = por %p77, %p78
      %p80 = scmp.ne.s32.totalorder %s68, %s69
      %p81 = scmp.eq.s32.totalorder %s17, 1
      %p82 = por %p80, %p81
      %p84 = scmp.ne.s32.totalorder %s69, %s83
      %p85 = scmp.eq.s32.totalorder %s17, 0
      %p86 = por %p84, %p85
      %s87 = ssub.s32 %s11, %s18
      %p88 = scmp.eq.s32.totalorder %s87, 0
      %s90 = sadd.s32 %s89, 1
      %s91 = scalar_select %p88, %s89, %s90
      %p94 = pneg %p88
      %p95 = scmp.eq.s32.totalorder %s11, 1
      %p96 = por %p94, %p95
      %p97 = scmp.ne.s32.totalorder %s89, %s92
      %p98 = scmp.eq.s32.totalorder %s11, 0
      %p99 = por %p97, %p98
      %p100 = scmp.ne.s32.totalorder %s89, %s92
      %p101 = scmp.eq.s32.totalorder %s16, 1
      %p102 = por %p100, %p101
      %p103 = scmp.ne.s32.totalorder %s92, %s93
      %p104 = scmp.eq.s32.totalorder %s16, 0
      %p105 = por %p103, %p104
      %p106 = scmp.ne.s32.totalorder %s92, %s93
      %p107 = scmp.eq.s32.totalorder %s17, 1
      %p108 = por %p106, %p107
      %p110 = scmp.ne.s32.totalorder %s93, %s109
      %p111 = scmp.eq.s32.totalorder %s17, 0
      %p112 = por %p110, %p111
      %p113 = scmp.le.s32.totalorder 1, %s11
      %p114 = scmp.lt.s32.totalorder %s11, 3
      %p115 = pnand %p113, %p114
      %p116 = pneg %p115
      // Predicated region
      $region9: #{spatial_gate.1} parent=5 // pred_check
        _
      $region10: #{spatial_gate.1} parent=5 // pred_check_branch
        %118 = sbr.rel (%p115) target = $region12
      $region11: #{spatial_gate.1} parent=5 // pred_region
        %s119 = ssub.s32 %s11, 1
        // Predicated region
        $region13: #{spatial_gate.1} parent=11 // pred_check
          %p120 = pneg %p58
        $region14: #{spatial_gate.1} parent=11 // pred_check_branch
          %122 = sbr.rel (%p120) target = $region16
        $region15: #{spatial_gate.1} parent=11 // pred_region
          %s124 = ssub.s32 16, 16
          %125 = vsyncadd [#allocation7], %s124
          %s127 = sshll.u32 %s1, 4
          %s128 = int_to_ptr.vmem [resolvable:$true] %s127
          %130 = dma.vmem_to_smem %s128, 16, [#allocation6], [#allocation7]
        $region16: #{spatial_gate.1} parent=11 // pred_fallthru
          _
        // Predicated region
        $region17: #{spatial_gate.1} parent=11 // pred_check
          %p131 = pneg %p79
        $region18: #{spatial_gate.1} parent=11 // pred_check_branch
          %133 = sbr.rel (%p131) target = $region20
        $region19: #{spatial_gate.1} parent=11 // pred_region
          _
        $region20: #{spatial_gate.1} parent=11 // pred_fallthru
          _
      $region12: #{spatial_gate.1} parent=5 // pred_fallthru
        _
      %p134 = scmp.lt.s32.totalorder %s11, 2
      // Predicated region
      $region21: #{spatial_gate.1} parent=5 // pred_check
        %p135 = pneg %p134
      $region22: #{spatial_gate.1} parent=5 // pred_check_branch
        %137 = sbr.rel (%p135) target = $region24
      $region23: #{spatial_gate.1} parent=5 // pred_region
        // Predicated region
        $region25: #{spatial_gate.1} parent=23 // pred_check
          %p138 = pneg %p31
        $region26: #{spatial_gate.1} parent=23 // pred_check_branch
          %140 = sbr.rel (%p138) target = $region28
        $region27: #{spatial_gate.1} parent=23 // pred_region
          %p141 = scmp.lt.s32.totalorder %s11, 1
          %s142 = scalar_select %p141, %s11, 1
          %s143 = smul.addr %s142, 2
          %s144 = smul.addr %s143, 4
          %s145 = scalar_lea.vmem %s0, %s144
        $region28: #{spatial_gate.1} parent=23 // pred_fallthru
          _
      $region24: #{spatial_gate.1} parent=5 // pred_fallthru
        _
      %p146 = scmp.le.s32.totalorder 1, %s11
      %p147 = scmp.lt.s32.totalorder %s11, 3
      %p148 = pnand %p146, %p147
      %p149 = pneg %p148
      // Predicated region
      $region29: #{spatial_gate.1} parent=5 // pred_check
        _
      $region30: #{spatial_gate.1} parent=5 // pred_check_branch
        %151 = sbr.rel (%p148) target = $region32
      $region31: #{spatial_gate.1} parent=5 // pred_region
        %s152 = ssub.s32 %s11, 1
        // Predicated region
        $region33: #{spatial_gate.1} parent=31 // pred_check
          %p153 = pneg %p58
        $region34: #{spatial_gate.1} parent=31 // pred_check_branch
          %155 = sbr.rel (%p153) target = $region36
        $region35: #{spatial_gate.1} parent=31 // pred_region
          %156 = dma.done [#allocation7], 16
        $region36: #{spatial_gate.1} parent=31 // pred_fallthru
          _
        %157 = sfence
        %p158 = scmp.lt.s32.totalorder %s16, 1
        %s159 = scalar_select %p158, %s16, 1
        %s160 = smul.addr %s159, 2
        %s161 = smul.addr %s160, 4
        %s162 = scalar_lea.vmem %s0, %s161
        %p163 = pneg %p37
        %p164 = pneg %p34
        %p165 = pneg %p58
        %p166 = pneg %p55
        %p167 = pneg %p79
        %p168 = pneg %p76
        %p169 = pneg %p105
        %p170 = pneg %p102
        %p171 = scmp.lt.s32.totalorder %s16, 1
        %s172 = scalar_select %p171, %s16, 1
        %s173 = smul.addr %s172, 2
        %s174 = smul.addr %s173, 4
        %s175 = scalar_lea.vmem %s3, %s174
        %p176 = scmp.lt.s32.totalorder %s16, 1
        %s177 = scalar_select %p176, %s16, 1
        %s178 = smul.addr %s177, 2
        %s179 = smul.addr %s178, 4
        %s180 = scalar_lea.vmem %s0, %s179
        %p181 = scmp.lt.s32.totalorder %s16, 1
        %s182 = scalar_select %p181, %s16, 1
        %s183 = smul.addr %s182, 2
        %s184 = smul.addr %s183, 4
        %s185 = scalar_lea.vmem %s3, %s184
        %vm186 = vcmask 174080
        %187 = vst.msk [vmem:[#allocation2] sm:$0x7] %vm186, 0.0
        %188 = vst.msk [vmem:[#allocation2 + $0x13] sm:$0x7] %vm186, 0.0
        %vm189 = vcmask 23552
        %190 = vst.msk [vmem:[#allocation2] sm:$0xff] %vm189, 0.0
        %191 = vst.msk [vmem:[#allocation2 + $0x8] sm:$0xff] %vm189, 0.0
        %vm192 = vcmask 21504
        %193 = vst.msk [vmem:[#allocation2 + $0x10] sm:$0x3f] %vm192, 0.0
        %vm194 = vcmask 179352
        %195 = vst.msk [vmem:[#allocation2] sm:$0xff] %vm194, 0.0
        %196 = vst.msk [vmem:[#allocation2 + $0x8] sm:$0xff] %vm194, 0.0
        %vm197 = vcmask 177304
        %198 = vst.msk [vmem:[#allocation2 + $0x10] sm:$0x3f] %vm197, 0.0
        %v199 = vld [vmem:[%s180] sm:$0xff]
        %v201 = vcombine.high %v199, %v199
        %vm203 = vcmask 1043456
        %v204 = vsel %vm203, %v199, 0.0
        %v205 = vrot.slane %v204, 4
        %v206 = vadd.f32 %v204, %v205
        %v207 = vrot.slane %v206, 2
        %v208 = vadd.f32 %v206, %v207
        %v209 = vrot.slane %v208, 1
        %v210 = vadd.f32 %v208, %v209
        %v211 = vsel %vm203, %v201, 0.0
        %v212 = vrot.slane %v211, 4
        %v213 = vadd.f32 %v211, %v212
        %v214 = vrot.slane %v213, 2
        %v215 = vadd.f32 %v213, %v214
        %v216 = vrot.slane %v215, 1
        %v217 = vadd.f32 %v215, %v216
        %v220 = vcombine.low %v210, %v217
        %v222 = vunpack.c.l.s4 1966171168
        %v223 = vunpack.c.0.s8 %v222
        %v224 = vlaneseq
        %v225 = vshrl.u32 %v224, 7
        %v226 = vsub.s32 %v223, %v225
        %v227 = vrot.slane %v220, %v226
        %v229 = vunpack.c.l.s4 1966171168
        %v230 = vunpack.c.0.s8 %v229
        %v231 = vlaneseq
        %v232 = vshrl.u32 %v231, 7
        %v233 = vsub.s32 %v230, %v232
        %v234 = vrot.slane %v227, %v233
        %v236 = vlaneseq
        %vm237 = vcmp.ge.s32.totalorder %v236, 0
        %vm238 = vcmp.lt.s32.totalorder %v236, 256
        %vm239 = vmand %vm237, %vm238
        %240 = vst.msk [vmem:[#allocation4] sm:$0x3] %vm239, %v234
        %v241 = vld [vmem:[#allocation4] sm:$0x1]
        %v243 = vlaneseq
        %v244 = vshrl.u32 %v243, 7
        %v245 = vsub.s32 0, %v244
        %v246 = vrot.slane %v241, %v245
        %247 = vrot.lane.b32.xlu0 %v246, 3
        %v248 = vpop.permute.xlu0 %247
        %vm250 = vcmask 147480
        %251 = vst.msk [vmem:[#allocation2 + $0x3] sm:$0x1] %vm250, %v248
        %v252 = vld [vmem:[#allocation4] sm:$0x1]
        %v254 = vlaneseq
        %v255 = vshrl.u32 %v254, 7
        %v256 = vsub.s32 0, %v255
        %v257 = vrot.slane %v252, %v256
        %258 = vrot.lane.b32.xlu0 %v257, 115
        %v259 = vpop.permute.xlu0 %258
        %261 = vst.msk [vmem:[#allocation2 + $0x4] sm:$0x1] %vm250, %v259
        %v262 = vld [vmem:[#allocation4] sm:$0x1]
        %v264 = vlaneseq
        %v265 = vshrl.u32 %v264, 7
        %v266 = vsub.s32 0, %v265
        %v267 = vrot.slane %v262, %v266
        %268 = vrot.lane.b32.xlu0 %v267, 99
        %v269 = vpop.permute.xlu0 %268
        %271 = vst.msk [vmem:[#allocation2 + $0x5] sm:$0x1] %vm250, %v269
        %v272 = vld [vmem:[#allocation4] sm:$0x1]
        %v274 = vlaneseq
        %v275 = vshrl.u32 %v274, 7
        %v276 = vsub.s32 0, %v275
        %v277 = vrot.slane %v272, %v276
        %278 = vrot.lane.b32.xlu0 %v277, 83
        %v279 = vpop.permute.xlu0 %278
        %281 = vst.msk [vmem:[#allocation2 + $0x6] sm:$0x1] %vm250, %v279
        %v282 = vld [vmem:[#allocation4] sm:$0x1]
        %v284 = vlaneseq
        %v285 = vshrl.u32 %v284, 7
        %v286 = vsub.s32 0, %v285
        %v287 = vrot.slane %v282, %v286
        %288 = vrot.lane.b32.xlu0 %v287, 67
        %v289 = vpop.permute.xlu0 %288
        %291 = vst.msk [vmem:[#allocation2 + $0x7] sm:$0x1] %vm250, %v289
        %v292 = vld [vmem:[#allocation4] sm:$0x1]
        %v294 = vlaneseq
        %v295 = vshrl.u32 %v294, 7
        %v296 = vsub.s32 0, %v295
        %v297 = vrot.slane %v292, %v296
        %298 = vrot.lane.b32.xlu0 %v297, 51
        %v299 = vpop.permute.xlu0 %298
        %301 = vst.msk [vmem:[#allocation2 + $0x8] sm:$0x1] %vm250, %v299
        %v302 = vld [vmem:[#allocation4] sm:$0x1]
        %v304 = vlaneseq
        %v305 = vshrl.u32 %v304, 7
        %v306 = vsub.s32 0, %v305
        %v307 = vrot.slane %v302, %v306
        %308 = vrot.lane.b32.xlu0 %v307, 35
        %v309 = vpop.permute.xlu0 %308
        %311 = vst.msk [vmem:[#allocation2 + $0x9] sm:$0x1] %vm250, %v309
        %v312 = vld [vmem:[#allocation4] sm:$0x1]
        %v314 = vlaneseq
        %v315 = vshrl.u32 %v314, 7
        %v316 = vsub.s32 0, %v315
        %v317 = vrot.slane %v312, %v316
        %318 = vrot.lane.b32.xlu0 %v317, 19
        %v319 = vpop.permute.xlu0 %318
        %321 = vst.msk [vmem:[#allocation2 + $0xa] sm:$0x1] %vm250, %v319
        %v322 = vld [vmem:[#allocation4 + $0x1] sm:$0x1]
        %v324 = vlaneseq
        %v325 = vshrl.u32 %v324, 7
        %v326 = vsub.s32 0, %v325
        %v327 = vrot.slane %v322, %v326
        %328 = vrot.lane.b32.xlu0 %v327, 3
        %v329 = vpop.permute.xlu0 %328
        %331 = vst.msk [vmem:[#allocation2 + $0xb] sm:$0x1] %vm250, %v329
        %v332 = vld [vmem:[#allocation4 + $0x1] sm:$0x1]
        %v334 = vlaneseq
        %v335 = vshrl.u32 %v334, 7
        %v336 = vsub.s32 0, %v335
        %v337 = vrot.slane %v332, %v336
        %338 = vrot.lane.b32.xlu0 %v337, 115
        %v339 = vpop.permute.xlu0 %338
        %341 = vst.msk [vmem:[#allocation2 + $0xc] sm:$0x1] %vm250, %v339
        %v342 = vld [vmem:[#allocation4 + $0x1] sm:$0x1]
        %v344 = vlaneseq
        %v345 = vshrl.u32 %v344, 7
        %v346 = vsub.s32 0, %v345
        %v347 = vrot.slane %v342, %v346
        %348 = vrot.lane.b32.xlu0 %v347, 99
        %v349 = vpop.permute.xlu0 %348
        %351 = vst.msk [vmem:[#allocation2 + $0xd] sm:$0x1] %vm250, %v349
        %v352 = vld [vmem:[#allocation4 + $0x1] sm:$0x1]
        %v354 = vlaneseq
        %v355 = vshrl.u32 %v354, 7
        %v356 = vsub.s32 0, %v355
        %v357 = vrot.slane %v352, %v356
        %358 = vrot.lane.b32.xlu0 %v357, 83
        %v359 = vpop.permute.xlu0 %358
        %361 = vst.msk [vmem:[#allocation2 + $0xe] sm:$0x1] %vm250, %v359
        %v362 = vld [vmem:[#allocation4 + $0x1] sm:$0x1]
        %v364 = vlaneseq
        %v365 = vshrl.u32 %v364, 7
        %v366 = vsub.s32 0, %v365
        %v367 = vrot.slane %v362, %v366
        %368 = vrot.lane.b32.xlu0 %v367, 67
        %v369 = vpop.permute.xlu0 %368
        %371 = vst.msk [vmem:[#allocation2 + $0xf] sm:$0x1] %vm250, %v369
        %v372 = vld [vmem:[#allocation4 + $0x1] sm:$0x1]
        %v374 = vlaneseq
        %v375 = vshrl.u32 %v374, 7
        %v376 = vsub.s32 0, %v375
        %v377 = vrot.slane %v372, %v376
        %378 = vrot.lane.b32.xlu0 %v377, 51
        %v379 = vpop.permute.xlu0 %378
        %381 = vst.msk [vmem:[#allocation2 + $0x10] sm:$0x1] %vm250, %v379
        %v382 = vld [vmem:[#allocation4 + $0x1] sm:$0x1]
        %v384 = vlaneseq
        %v385 = vshrl.u32 %v384, 7
        %v386 = vsub.s32 0, %v385
        %v387 = vrot.slane %v382, %v386
        %388 = vrot.lane.b32.xlu0 %v387, 35
        %v389 = vpop.permute.xlu0 %388
        %391 = vst.msk [vmem:[#allocation2 + $0x11] sm:$0x1] %vm250, %v389
        %v392 = vld [vmem:[#allocation4 + $0x1] sm:$0x1]
        %v394 = vlaneseq
        %v395 = vshrl.u32 %v394, 7
        %v396 = vsub.s32 0, %v395
        %v397 = vrot.slane %v392, %v396
        %398 = vrot.lane.b32.xlu0 %v397, 19
        %v399 = vpop.permute.xlu0 %398
        %401 = vst.msk [vmem:[#allocation2 + $0x12] sm:$0x1] %vm250, %v399
        %s402 = sld [smem:[#allocation5]]
        %v403 = vld [vmem:[#allocation2] sm:$0xff]
        %v404 = vld [vmem:[#allocation2 + $0x8] sm:$0xff]
        %v405 = vld [vmem:[#allocation2 + $0x10] sm:$0x3f]
        %vm406 = vcmask 130048
        %407 = vst.msk [vmem:[#allocation3] sm:$0xff] %vm406, %v403
        %408 = vst.msk [vmem:[#allocation3 + $0x8] sm:$0xff] %vm406, %v404
        %vm409 = vcmask 128000
        %410 = vst.msk [vmem:[#allocation3 + $0x10] sm:$0x3f] %vm409, %v405
        %s411 = sld [smem:[#allocation6]]
        %v412 = vld [vmem:[#allocation3] sm:$0xff]
        %v413 = vld [vmem:[#allocation3 + $0x8] sm:$0xff]
        %v414 = vstv %s411
        %v415 = vmul.f32 %v414, %v412
        %v416 = vmul.f32 %v414, %v413
        %v417 = vadd.f32 %v415, 0.0
        %v418 = vadd.f32 %v416, 0.0
        %s419 = sld [smem:[#allocation6 + $0x7]]
        %v420 = vld [vmem:[#allocation3 + $0x1] sm:$0xff]
        %v421 = vld [vmem:[#allocation3 + $0x9] sm:$0xff]
        %v422 = vstv %s419
        %v423 = vmul.f32 %v422, %v420
        %v424 = vmul.f32 %v422, %v421
        %v425 = vadd.f32 %v423, 0.0
        %v426 = vadd.f32 %v424, 0.0
        %s427 = sld [smem:[#allocation6 + $0xe]]
        %v428 = vld [vmem:[#allocation3 + $0x2] sm:$0xff]
        %v429 = vld [vmem:[#allocation3 + $0xa] sm:$0xff]
        %v430 = vstv %s427
        %v431 = vmul.f32 %v430, %v428
        %v432 = vmul.f32 %v430, %v429
        %v433 = vadd.f32 %v431, 0.0
        %v434 = vadd.f32 %v432, 0.0
        %s435 = sld [smem:[#allocation6 + $0x15]]
        %v436 = vld [vmem:[#allocation3 + $0x3] sm:$0xff]
        %v437 = vld [vmem:[#allocation3 + $0xb] sm:$0xff]
        %v438 = vstv %s435
        %v439 = vmul.f32 %v438, %v436
        %v440 = vmul.f32 %v438, %v437
        %v441 = vadd.f32 %v439, 0.0
        %v442 = vadd.f32 %v440, 0.0
        %s443 = sld [smem:[#allocation6 + $0x1c]]
        %v444 = vld [vmem:[#allocation3 + $0x4] sm:$0xff]
        %v445 = vld [vmem:[#allocation3 + $0xc] sm:$0xff]
        %v446 = vstv %s443
        %v447 = vmul.f32 %v446, %v444
        %v448 = vmul.f32 %v446, %v445
        %v449 = vadd.f32 %v417, %v447
        %v450 = vadd.f32 %v418, %v448
        %s451 = sld [smem:[#allocation6 + $0x23]]
        %v452 = vld [vmem:[#allocation3 + $0x5] sm:$0xff]
        %v453 = vld [vmem:[#allocation3 + $0xd] sm:$0xff]
        %v454 = vstv %s451
        %v455 = vmul.f32 %v454, %v452
        %v456 = vmul.f32 %v454, %v453
        %v457 = vadd.f32 %v425, %v455
        %v458 = vadd.f32 %v426, %v456
        %s459 = sld [smem:[#allocation6 + $0x2a]]
        %v460 = vld [vmem:[#allocation3 + $0x6] sm:$0xff]
        %v461 = vld [vmem:[#allocation3 + $0xe] sm:$0xff]
        %v462 = vstv %s459
        %v463 = vmul.f32 %v462, %v460
        %v464 = vmul.f32 %v462, %v461
        %v465 = vadd.f32 %v433, %v463
        %v466 = vadd.f32 %v434, %v464
        %v467 = vld [vmem:[#allocation2] sm:$0xff]
        %v468 = vld [vmem:[#allocation2 + $0x8] sm:$0xff]
        %v469 = vld [vmem:[#allocation2 + $0x10] sm:$0x3f]
        %473 = vrot.lane.b32.xlu0 %v467, 127
        %v474 = vpop.permute.xlu0 %473
        %475 = vrot.lane.b32.xlu0 %v468, 127
        %v476 = vpop.permute.xlu0 %475
        %477 = vrot.lane.b32.xlu0 %v469, 127
        %v478 = vpop.permute.xlu0 %477
        %482 = vst.msk [vmem:[#allocation3] sm:$0xff] %vm406, %v474
        %483 = vst.msk [vmem:[#allocation3 + $0x8] sm:$0xff] %vm406, %v476
        %484 = vst.msk [vmem:[#allocation3 + $0x10] sm:$0x3f] %vm409, %v478
        %s485 = sld [smem:[#allocation6 + $0x1]]
        %v486 = vld [vmem:[#allocation3] sm:$0xff]
        %v487 = vld [vmem:[#allocation3 + $0x8] sm:$0xff]
        %v488 = vstv %s485
        %v489 = vmul.f32 %v488, %v486
        %v490 = vmul.f32 %v488, %v487
        %v491 = vadd.f32 %v449, %v489
        %v492 = vadd.f32 %v450, %v490
        %s493 = sld [smem:[#allocation6 + $0x8]]
        %v494 = vld [vmem:[#allocation3 + $0x1] sm:$0xff]
        %v495 = vld [vmem:[#allocation3 + $0x9] sm:$0xff]
        %v496 = vstv %s493
        %v497 = vmul.f32 %v496, %v494
        %v498 = vmul.f32 %v496, %v495
        %v499 = vadd.f32 %v457, %v497
        %v500 = vadd.f32 %v458, %v498
        %s501 = sld [smem:[#allocation6 + $0xf]]
        %v502 = vld [vmem:[#allocation3 + $0x2] sm:$0xff]
        %v503 = vld [vmem:[#allocation3 + $0xa] sm:$0xff]
        %v504 = vstv %s501
        %v505 = vmul.f32 %v504, %v502
        %v506 = vmul.f32 %v504, %v503
        %v507 = vadd.f32 %v465, %v505
        %v508 = vadd.f32 %v466, %v506
        %s509 = sld [smem:[#allocation6 + $0x16]]
        %v510 = vld [vmem:[#allocation3 + $0x3] sm:$0xff]
        %v511 = vld [vmem:[#allocation3 + $0xb] sm:$0xff]
        %v512 = vstv %s509
        %v513 = vmul.f32 %v512, %v510
        %v514 = vmul.f32 %v512, %v511
        %v515 = vadd.f32 %v441, %v513
        %v516 = vadd.f32 %v442, %v514
        %s517 = sld [smem:[#allocation6 + $0x1d]]
        %v518 = vld [vmem:[#allocation3 + $0x4] sm:$0xff]
        %v519 = vld [vmem:[#allocation3 + $0xc] sm:$0xff]
        %v520 = vstv %s517
        %v521 = vmul.f32 %v520, %v518
        %v522 = vmul.f32 %v520, %v519
        %v523 = vadd.f32 %v491, %v521
        %v524 = vadd.f32 %v492, %v522
        %s525 = sld [smem:[#allocation6 + $0x24]]
        %v526 = vld [vmem:[#allocation3 + $0x5] sm:$0xff]
        %v527 = vld [vmem:[#allocation3 + $0xd] sm:$0xff]
        %v528 = vstv %s525
        %v529 = vmul.f32 %v528, %v526
        %v530 = vmul.f32 %v528, %v527
        %v531 = vadd.f32 %v499, %v529
        %v532 = vadd.f32 %v500, %v530
        %s533 = sld [smem:[#allocation6 + $0x2b]]
        %v534 = vld [vmem:[#allocation3 + $0x6] sm:$0xff]
        %v535 = vld [vmem:[#allocation3 + $0xe] sm:$0xff]
        %v536 = vstv %s533
        %v537 = vmul.f32 %v536, %v534
        %v538 = vmul.f32 %v536, %v535
        %v539 = vadd.f32 %v507, %v537
        %v540 = vadd.f32 %v508, %v538
        %v541 = vld [vmem:[#allocation2] sm:$0xff]
        %v542 = vld [vmem:[#allocation2 + $0x8] sm:$0xff]
        %v543 = vld [vmem:[#allocation2 + $0x10] sm:$0x3f]
        %547 = vrot.lane.b32.xlu0 %v541, 126
        %v548 = vpop.permute.xlu0 %547
        %549 = vrot.lane.b32.xlu0 %v542, 126
        %v550 = vpop.permute.xlu0 %549
        %551 = vrot.lane.b32.xlu0 %v543, 126
        %v552 = vpop.permute.xlu0 %551
        %556 = vst.msk [vmem:[#allocation3] sm:$0xff] %vm406, %v548
        %557 = vst.msk [vmem:[#allocation3 + $0x8] sm:$0xff] %vm406, %v550
        %558 = vst.msk [vmem:[#allocation3 + $0x10] sm:$0x3f] %vm409, %v552
        %s559 = sld [smem:[#allocation6 + $0x2]]
        %v560 = vld [vmem:[#allocation3] sm:$0xff]
        %v561 = vld [vmem:[#allocation3 + $0x8] sm:$0xff]
        %v562 = vstv %s559
        %v563 = vmul.f32 %v562, %v560
        %v564 = vmul.f32 %v562, %v561
        %v565 = vadd.f32 %v523, %v563
        %v566 = vadd.f32 %v524, %v564
        %s567 = sld [smem:[#allocation6 + $0x9]]
        %v568 = vld [vmem:[#allocation3 + $0x1] sm:$0xff]
        %v569 = vld [vmem:[#allocation3 + $0x9] sm:$0xff]
        %v570 = vstv %s567
        %v571 = vmul.f32 %v570, %v568
        %v572 = vmul.f32 %v570, %v569
        %v573 = vadd.f32 %v531, %v571
        %v574 = vadd.f32 %v532, %v572
        %s575 = sld [smem:[#allocation6 + $0x10]]
        %v576 = vld [vmem:[#allocation3 + $0x2] sm:$0xff]
        %v577 = vld [vmem:[#allocation3 + $0xa] sm:$0xff]
        %v578 = vstv %s575
        %v579 = vmul.f32 %v578, %v576
        %v580 = vmul.f32 %v578, %v577
        %v581 = vadd.f32 %v539, %v579
        %v582 = vadd.f32 %v540, %v580
        %s583 = sld [smem:[#allocation6 + $0x17]]
        %v584 = vld [vmem:[#allocation3 + $0x3] sm:$0xff]
        %v585 = vld [vmem:[#allocation3 + $0xb] sm:$0xff]
        %v586 = vstv %s583
        %v587 = vmul.f32 %v586, %v584
        %v588 = vmul.f32 %v586, %v585
        %v589 = vadd.f32 %v515, %v587
        %v590 = vadd.f32 %v516, %v588
        %s591 = sld [smem:[#allocation6 + $0x1e]]
        %v592 = vld [vmem:[#allocation3 + $0x4] sm:$0xff]
        %v593 = vld [vmem:[#allocation3 + $0xc] sm:$0xff]
        %v594 = vstv %s591
        %v595 = vmul.f32 %v594, %v592
        %v596 = vmul.f32 %v594, %v593
        %v597 = vadd.f32 %v565, %v595
        %v598 = vadd.f32 %v566, %v596
        %s599 = sld [smem:[#allocation6 + $0x25]]
        %v600 = vld [vmem:[#allocation3 + $0x5] sm:$0xff]
        %v601 = vld [vmem:[#allocation3 + $0xd] sm:$0xff]
        %v602 = vstv %s599
        %v603 = vmul.f32 %v602, %v600
        %v604 = vmul.f32 %v602, %v601
        %v605 = vadd.f32 %v573, %v603
        %v606 = vadd.f32 %v574, %v604
        %s607 = sld [smem:[#allocation6 + $0x2c]]
        %v608 = vld [vmem:[#allocation3 + $0x6] sm:$0xff]
        %v609 = vld [vmem:[#allocation3 + $0xe] sm:$0xff]
        %v610 = vstv %s607
        %v611 = vmul.f32 %v610, %v608
        %v612 = vmul.f32 %v610, %v609
        %v613 = vadd.f32 %v581, %v611
        %v614 = vadd.f32 %v582, %v612
        %v615 = vld [vmem:[#allocation2] sm:$0xff]
        %v616 = vld [vmem:[#allocation2 + $0x8] sm:$0xff]
        %v617 = vld [vmem:[#allocation2 + $0x10] sm:$0x3f]
        %621 = vrot.lane.b32.xlu0 %v615, 125
        %v622 = vpop.permute.xlu0 %621
        %623 = vrot.lane.b32.xlu0 %v616, 125
        %v624 = vpop.permute.xlu0 %623
        %625 = vrot.lane.b32.xlu0 %v617, 125
        %v626 = vpop.permute.xlu0 %625
        %630 = vst.msk [vmem:[#allocation3] sm:$0xff] %vm406, %v622
        %631 = vst.msk [vmem:[#allocation3 + $0x8] sm:$0xff] %vm406, %v624
        %632 = vst.msk [vmem:[#allocation3 + $0x10] sm:$0x3f] %vm409, %v626
        %s633 = sld [smem:[#allocation6 + $0x3]]
        %v634 = vld [vmem:[#allocation3] sm:$0xff]
        %v635 = vld [vmem:[#allocation3 + $0x8] sm:$0xff]
        %v636 = vstv %s633
        %v637 = vmul.f32 %v636, %v634
        %v638 = vmul.f32 %v636, %v635
        %v639 = vadd.f32 %v597, %v637
        %v640 = vadd.f32 %v598, %v638
        %s641 = sld [smem:[#allocation6 + $0xa]]
        %v642 = vld [vmem:[#allocation3 + $0x1] sm:$0xff]
        %v643 = vld [vmem:[#allocation3 + $0x9] sm:$0xff]
        %v644 = vstv %s641
        %v645 = vmul.f32 %v644, %v642
        %v646 = vmul.f32 %v644, %v643
        %v647 = vadd.f32 %v605, %v645
        %v648 = vadd.f32 %v606, %v646
        %s649 = sld [smem:[#allocation6 + $0x11]]
        %v650 = vld [vmem:[#allocation3 + $0x2] sm:$0xff]
        %v651 = vld [vmem:[#allocation3 + $0xa] sm:$0xff]
        %v652 = vstv %s649
        %v653 = vmul.f32 %v652, %v650
        %v654 = vmul.f32 %v652, %v651
        %v655 = vadd.f32 %v613, %v653
        %v656 = vadd.f32 %v614, %v654
        %s657 = sld [smem:[#allocation6 + $0x18]]
        %v658 = vld [vmem:[#allocation3 + $0x3] sm:$0xff]
        %v659 = vld [vmem:[#allocation3 + $0xb] sm:$0xff]
        %v660 = vstv %s657
        %v661 = vmul.f32 %v660, %v658
        %v662 = vmul.f32 %v660, %v659
        %v663 = vadd.f32 %v589, %v661
        %v664 = vadd.f32 %v590, %v662
        %s665 = sld [smem:[#allocation6 + $0x1f]]
        %v666 = vld [vmem:[#allocation3 + $0x4] sm:$0xff]
        %v667 = vld [vmem:[#allocation3 + $0xc] sm:$0xff]
        %v668 = vstv %s665
        %v669 = vmul.f32 %v668, %v666
        %v670 = vmul.f32 %v668, %v667
        %v671 = vadd.f32 %v639, %v669
        %v672 = vadd.f32 %v640, %v670
        %s673 = sld [smem:[#allocation6 + $0x26]]
        %v674 = vld [vmem:[#allocation3 + $0x5] sm:$0xff]
        %v675 = vld [vmem:[#allocation3 + $0xd] sm:$0xff]
        %v676 = vstv %s673
        %v677 = vmul.f32 %v676, %v674
        %v678 = vmul.f32 %v676, %v675
        %v679 = vadd.f32 %v647, %v677
        %v680 = vadd.f32 %v648, %v678
        %s681 = sld [smem:[#allocation6 + $0x2d]]
        %v682 = vld [vmem:[#allocation3 + $0x6] sm:$0xff]
        %v683 = vld [vmem:[#allocation3 + $0xe] sm:$0xff]
        %v684 = vstv %s681
        %v685 = vmul.f32 %v684, %v682
        %v686 = vmul.f32 %v684, %v683
        %v687 = vadd.f32 %v655, %v685
        %v688 = vadd.f32 %v656, %v686
        %v689 = vld [vmem:[#allocation2] sm:$0xff]
        %v690 = vld [vmem:[#allocation2 + $0x8] sm:$0xff]
        %v691 = vld [vmem:[#allocation2 + $0x10] sm:$0x3f]
        %695 = vrot.lane.b32.xlu0 %v689, 124
        %v696 = vpop.permute.xlu0 %695
        %697 = vrot.lane.b32.xlu0 %v690, 124
        %v698 = vpop.permute.xlu0 %697
        %699 = vrot.lane.b32.xlu0 %v691, 124
        %v700 = vpop.permute.xlu0 %699
        %704 = vst.msk [vmem:[#allocation3] sm:$0xff] %vm406, %v696
        %705 = vst.msk [vmem:[#allocation3 + $0x8] sm:$0xff] %vm406, %v698
        %706 = vst.msk [vmem:[#allocation3 + $0x10] sm:$0x3f] %vm409, %v700
        %s707 = sld [smem:[#allocation6 + $0x4]]
        %v708 = vld [vmem:[#allocation3] sm:$0xff]
        %v709 = vld [vmem:[#allocation3 + $0x8] sm:$0xff]
        %v710 = vstv %s707
        %v711 = vmul.f32 %v710, %v708
        %v712 = vmul.f32 %v710, %v709
        %v713 = vadd.f32 %v671, %v711
        %v714 = vadd.f32 %v672, %v712
        %s715 = sld [smem:[#allocation6 + $0xb]]
        %v716 = vld [vmem:[#allocation3 + $0x1] sm:$0xff]
        %v717 = vld [vmem:[#allocation3 + $0x9] sm:$0xff]
        %v718 = vstv %s715
        %v719 = vmul.f32 %v718, %v716
        %v720 = vmul.f32 %v718, %v717
        %v721 = vadd.f32 %v679, %v719
        %v722 = vadd.f32 %v680, %v720
        %s723 = sld [smem:[#allocation6 + $0x12]]
        %v724 = vld [vmem:[#allocation3 + $0x2] sm:$0xff]
        %v725 = vld [vmem:[#allocation3 + $0xa] sm:$0xff]
        %v726 = vstv %s723
        %v727 = vmul.f32 %v726, %v724
        %v728 = vmul.f32 %v726, %v725
        %v729 = vadd.f32 %v687, %v727
        %v730 = vadd.f32 %v688, %v728
        %s731 = sld [smem:[#allocation6 + $0x19]]
        %v732 = vld [vmem:[#allocation3 + $0x3] sm:$0xff]
        %v733 = vld [vmem:[#allocation3 + $0xb] sm:$0xff]
        %v734 = vstv %s731
        %v735 = vmul.f32 %v734, %v732
        %v736 = vmul.f32 %v734, %v733
        %v737 = vadd.f32 %v663, %v735
        %v738 = vadd.f32 %v664, %v736
        %s739 = sld [smem:[#allocation6 + $0x20]]
        %v740 = vld [vmem:[#allocation3 + $0x4] sm:$0xff]
        %v741 = vld [vmem:[#allocation3 + $0xc] sm:$0xff]
        %v742 = vstv %s739
        %v743 = vmul.f32 %v742, %v740
        %v744 = vmul.f32 %v742, %v741
        %v745 = vadd.f32 %v713, %v743
        %v746 = vadd.f32 %v714, %v744
        %s747 = sld [smem:[#allocation6 + $0x27]]
        %v748 = vld [vmem:[#allocation3 + $0x5] sm:$0xff]
        %v749 = vld [vmem:[#allocation3 + $0xd] sm:$0xff]
        %v750 = vstv %s747
        %v751 = vmul.f32 %v750, %v748
        %v752 = vmul.f32 %v750, %v749
        %v753 = vadd.f32 %v721, %v751
        %v754 = vadd.f32 %v722, %v752
        %s755 = sld [smem:[#allocation6 + $0x2e]]
        %v756 = vld [vmem:[#allocation3 + $0x6] sm:$0xff]
        %v757 = vld [vmem:[#allocation3 + $0xe] sm:$0xff]
        %v758 = vstv %s755
        %v759 = vmul.f32 %v758, %v756
        %v760 = vmul.f32 %v758, %v757
        %v761 = vadd.f32 %v729, %v759
        %v762 = vadd.f32 %v730, %v760
        %v763 = vld [vmem:[#allocation2] sm:$0xff]
        %v764 = vld [vmem:[#allocation2 + $0x8] sm:$0xff]
        %v765 = vld [vmem:[#allocation2 + $0x10] sm:$0x3f]
        %769 = vrot.lane.b32.xlu0 %v763, 123
        %v770 = vpop.permute.xlu0 %769
        %771 = vrot.lane.b32.xlu0 %v764, 123
        %v772 = vpop.permute.xlu0 %771
        %773 = vrot.lane.b32.xlu0 %v765, 123
        %v774 = vpop.permute.xlu0 %773
        %778 = vst.msk [vmem:[#allocation3] sm:$0xff] %vm406, %v770
        %779 = vst.msk [vmem:[#allocation3 + $0x8] sm:$0xff] %vm406, %v772
        %780 = vst.msk [vmem:[#allocation3 + $0x10] sm:$0x3f] %vm409, %v774
        %s781 = sld [smem:[#allocation6 + $0x5]]
        %v782 = vld [vmem:[#allocation3] sm:$0xff]
        %v783 = vld [vmem:[#allocation3 + $0x8] sm:$0xff]
        %v784 = vstv %s781
        %v785 = vmul.f32 %v784, %v782
        %v786 = vmul.f32 %v784, %v783
        %v787 = vadd.f32 %v745, %v785
        %v788 = vadd.f32 %v746, %v786
        %s789 = sld [smem:[#allocation6 + $0xc]]
        %v790 = vld [vmem:[#allocation3 + $0x1] sm:$0xff]
        %v791 = vld [vmem:[#allocation3 + $0x9] sm:$0xff]
        %v792 = vstv %s789
        %v793 = vmul.f32 %v792, %v790
        %v794 = vmul.f32 %v792, %v791
        %v795 = vadd.f32 %v753, %v793
        %v796 = vadd.f32 %v754, %v794
        %s797 = sld [smem:[#allocation6 + $0x13]]
        %v798 = vld [vmem:[#allocation3 + $0x2] sm:$0xff]
        %v799 = vld [vmem:[#allocation3 + $0xa] sm:$0xff]
        %v800 = vstv %s797
        %v801 = vmul.f32 %v800, %v798
        %v802 = vmul.f32 %v800, %v799
        %v803 = vadd.f32 %v761, %v801
        %v804 = vadd.f32 %v762, %v802
        %s805 = sld [smem:[#allocation6 + $0x1a]]
        %v806 = vld [vmem:[#allocation3 + $0x3] sm:$0xff]
        %v807 = vld [vmem:[#allocation3 + $0xb] sm:$0xff]
        %v808 = vstv %s805
        %v809 = vmul.f32 %v808, %v806
        %v810 = vmul.f32 %v808, %v807
        %v811 = vadd.f32 %v737, %v809
        %v812 = vadd.f32 %v738, %v810
        %s813 = sld [smem:[#allocation6 + $0x21]]
        %v814 = vld [vmem:[#allocation3 + $0x4] sm:$0xff]
        %v815 = vld [vmem:[#allocation3 + $0xc] sm:$0xff]
        %v816 = vstv %s813
        %v817 = vmul.f32 %v816, %v814
        %v818 = vmul.f32 %v816, %v815
        %v819 = vadd.f32 %v787, %v817
        %v820 = vadd.f32 %v788, %v818
        %s821 = sld [smem:[#allocation6 + $0x28]]
        %v822 = vld [vmem:[#allocation3 + $0x5] sm:$0xff]
        %v823 = vld [vmem:[#allocation3 + $0xd] sm:$0xff]
        %v824 = vstv %s821
        %v825 = vmul.f32 %v824, %v822
        %v826 = vmul.f32 %v824, %v823
        %v827 = vadd.f32 %v795, %v825
        %v828 = vadd.f32 %v796, %v826
        %s829 = sld [smem:[#allocation6 + $0x2f]]
        %v830 = vld [vmem:[#allocation3 + $0x6] sm:$0xff]
        %v831 = vld [vmem:[#allocation3 + $0xe] sm:$0xff]
        %v832 = vstv %s829
        %v833 = vmul.f32 %v832, %v830
        %v834 = vmul.f32 %v832, %v831
        %v835 = vadd.f32 %v803, %v833
        %v836 = vadd.f32 %v804, %v834
        %v837 = vld [vmem:[#allocation2] sm:$0xff]
        %v838 = vld [vmem:[#allocation2 + $0x8] sm:$0xff]
        %v839 = vld [vmem:[#allocation2 + $0x10] sm:$0x3f]
        %843 = vrot.lane.b32.xlu0 %v837, 122
        %v844 = vpop.permute.xlu0 %843
        %845 = vrot.lane.b32.xlu0 %v838, 122
        %v846 = vpop.permute.xlu0 %845
        %847 = vrot.lane.b32.xlu0 %v839, 122
        %v848 = vpop.permute.xlu0 %847
        %852 = vst.msk [vmem:[#allocation3] sm:$0xff] %vm406, %v844
        %853 = vst.msk [vmem:[#allocation3 + $0x8] sm:$0xff] %vm406, %v846
        %854 = vst.msk [vmem:[#allocation3 + $0x10] sm:$0x3f] %vm409, %v848
        %s855 = sld [smem:[#allocation6 + $0x6]]
        %v856 = vld [vmem:[#allocation3] sm:$0xff]
        %v857 = vld [vmem:[#allocation3 + $0x8] sm:$0xff]
        %v858 = vstv %s855
        %v859 = vmul.f32 %v858, %v856
        %v860 = vmul.f32 %v858, %v857
        %v861 = vadd.f32 %v819, %v859
        %v862 = vadd.f32 %v820, %v860
        %s863 = sld [smem:[#allocation6 + $0xd]]
        %v864 = vld [vmem:[#allocation3 + $0x1] sm:$0xff]
        %v865 = vld [vmem:[#allocation3 + $0x9] sm:$0xff]
        %v866 = vstv %s863
        %v867 = vmul.f32 %v866, %v864
        %v868 = vmul.f32 %v866, %v865
        %v869 = vadd.f32 %v827, %v867
        %v870 = vadd.f32 %v828, %v868
        %s871 = sld [smem:[#allocation6 + $0x14]]
        %v872 = vld [vmem:[#allocation3 + $0x2] sm:$0xff]
        %v873 = vld [vmem:[#allocation3 + $0xa] sm:$0xff]
        %v874 = vstv %s871
        %v875 = vmul.f32 %v874, %v872
        %v876 = vmul.f32 %v874, %v873
        %v877 = vadd.f32 %v835, %v875
        %v878 = vadd.f32 %v836, %v876
        %s879 = sld [smem:[#allocation6 + $0x1b]]
        %v880 = vld [vmem:[#allocation3 + $0x3] sm:$0xff]
        %v881 = vld [vmem:[#allocation3 + $0xb] sm:$0xff]
        %v882 = vstv %s879
        %v883 = vmul.f32 %v882, %v880
        %v884 = vmul.f32 %v882, %v881
        %v885 = vadd.f32 %v811, %v883
        %v886 = vadd.f32 %v812, %v884
        %s887 = sld [smem:[#allocation6 + $0x22]]
        %v888 = vld [vmem:[#allocation3 + $0x4] sm:$0xff]
        %v889 = vld [vmem:[#allocation3 + $0xc] sm:$0xff]
        %v890 = vstv %s887
        %v891 = vmul.f32 %v890, %v888
        %v892 = vmul.f32 %v890, %v889
        %v893 = vadd.f32 %v861, %v891
        %v894 = vadd.f32 %v862, %v892
        %s895 = sld [smem:[#allocation6 + $0x29]]
        %v896 = vld [vmem:[#allocation3 + $0x5] sm:$0xff]
        %v897 = vld [vmem:[#allocation3 + $0xd] sm:$0xff]
        %v898 = vstv %s895
        %v899 = vmul.f32 %v898, %v896
        %v900 = vmul.f32 %v898, %v897
        %v901 = vadd.f32 %v869, %v899
        %v902 = vadd.f32 %v870, %v900
        %s903 = sld [smem:[#allocation6 + $0x30]]
        %v904 = vld [vmem:[#allocation3 + $0x6] sm:$0xff]
        %v905 = vld [vmem:[#allocation3 + $0xe] sm:$0xff]
        %v906 = vstv %s903
        %v907 = vmul.f32 %v906, %v904
        %v908 = vmul.f32 %v906, %v905
        %v909 = vadd.f32 %v877, %v907
        %v910 = vadd.f32 %v878, %v908
        %v911 = vadd.f32 %v893, %v901
        %v912 = vadd.f32 %v894, %v902
        %v913 = vadd.f32 %v911, %v909
        %v914 = vadd.f32 %v912, %v910
        %v915 = vadd.f32 %v913, %v885
        %v916 = vadd.f32 %v914, %v886
        %v917 = vstv %s402
        %v918 = vadd.f32 %v915, %v917
        %v919 = vadd.f32 %v916, %v917
        %v920 = vxor.u32 %v918, 2147483648
        %v921 = vxor.u32 %v919, 2147483648
        %v922 = vmul.f32 %v920, 1.442695
        %v923 = vpow.pop %v922
        %v924 = vmul.f32 %v921, 1.442695
        %v925 = vpow.pop %v924
        %v926 = vadd.f32 %v923, 1.0
        %v927 = vadd.f32 %v925, 1.0
        %v928 = vrcp.pop %v926
        %v929 = vmul.f32 1.0, %v928
        %v930 = vrcp.pop %v927
        %v931 = vmul.f32 1.0, %v930
        %934 = vrot.lane.b32.xlu0 %v929, 3
        %v935 = vpop.permute.xlu0 %934
        %936 = vrot.lane.b32.xlu0 %v931, 3
        %v937 = vpop.permute.xlu0 %936
        %vm940 = vcmask 154648
        %941 = vst.msk [vmem:[#allocation2 + $0x3] sm:$0xff] %vm940, %v935
        %942 = vst.msk [vmem:[#allocation2 + $0xb] sm:$0xff] %vm940, %v937
        %v943 = vld [vmem:[#allocation2 + $0x3] sm:$0x1]
        %v946 = vunpack.c.l.s4 1966171168
        %v947 = vunpack.c.0.s8 %v946
        %v948 = vlaneseq
        %v949 = vshrl.u32 %v948, 7
        %v950 = vsub.s32 %v947, %v949
        %v951 = vrot.slane %v943, %v950
        %v953 = vunpack.c.l.s4 1966171168
        %v954 = vunpack.c.0.s8 %v953
        %v955 = vlaneseq
        %v956 = vshrl.u32 %v955, 7
        %v957 = vsub.s32 %v954, %v956
        %v958 = vrot.slane %v951, %v957
        %959 = vrot.lane.b32.xlu0 %v958, 125
        %v960 = vpop.permute.xlu0 %959
        %vm962 = vcmp.lt.s32.totalorder %v236, 16
        %vm963 = vmand %vm237, %vm962
        %964 = vst.msk [vmem:[#allocation4] sm:$0x1] %vm963, %v960
        %v965 = vld [vmem:[#allocation2 + $0x4] sm:$0x1]
        %v968 = vunpack.c.l.s4 1966171168
        %v969 = vunpack.c.0.s8 %v968
        %v970 = vlaneseq
        %v971 = vshrl.u32 %v970, 7
        %v972 = vsub.s32 %v969, %v971
        %v973 = vrot.slane %v965, %v972
        %v975 = vunpack.c.l.s4 1966171168
        %v976 = vunpack.c.0.s8 %v975
        %v977 = vlaneseq
        %v978 = vshrl.u32 %v977, 7
        %v979 = vsub.s32 %v976, %v978
        %v980 = vrot.slane %v973, %v979
        %981 = vrot.lane.b32.xlu0 %v980, 13
        %v982 = vpop.permute.xlu0 %981
        %vm984 = vcmp.ge.s32.totalorder %v236, 16
        %vm985 = vcmp.lt.s32.totalorder %v236, 32
        %vm986 = vmand %vm984, %vm985
        %987 = vst.msk [vmem:[#allocation4] sm:$0x1] %vm986, %v982
        %v988 = vld [vmem:[#allocation2 + $0x5] sm:$0x1]
        %v991 = vunpack.c.l.s4 1966171168
        %v992 = vunpack.c.0.s8 %v991
        %v993 = vlaneseq
        %v994 = vshrl.u32 %v993, 7
        %v995 = vsub.s32 %v992, %v994
        %v996 = vrot.slane %v988, %v995
        %v998 = vunpack.c.l.s4 1966171168
        %v999 = vunpack.c.0.s8 %v998
        %v1000 = vlaneseq
        %v1001 = vshrl.u32 %v1000, 7
        %v1002 = vsub.s32 %v999, %v1001
        %v1003 = vrot.slane %v996, %v1002
        %1004 = vrot.lane.b32.xlu0 %v1003, 29
        %v1005 = vpop.permute.xlu0 %1004
        %vm1007 = vcmp.ge.s32.totalorder %v236, 32
        %vm1008 = vcmp.lt.s32.totalorder %v236, 48
        %vm1009 = vmand %vm1007, %vm1008
        %1010 = vst.msk [vmem:[#allocation4] sm:$0x1] %vm1009, %v1005
        %v1011 = vld [vmem:[#allocation2 + $0x6] sm:$0x1]
        %v1014 = vunpack.c.l.s4 1966171168
        %v1015 = vunpack.c.0.s8 %v1014
        %v1016 = vlaneseq
        %v1017 = vshrl.u32 %v1016, 7
        %v1018 = vsub.s32 %v1015, %v1017
        %v1019 = vrot.slane %v1011, %v1018
        %v1021 = vunpack.c.l.s4 1966171168
        %v1022 = vunpack.c.0.s8 %v1021
        %v1023 = vlaneseq
        %v1024 = vshrl.u32 %v1023, 7
        %v1025 = vsub.s32 %v1022, %v1024
        %v1026 = vrot.slane %v1019, %v1025
        %1027 = vrot.lane.b32.xlu0 %v1026, 45
        %v1028 = vpop.permute.xlu0 %1027
        %vm1030 = vcmp.ge.s32.totalorder %v236, 48
        %vm1031 = vcmp.lt.s32.totalorder %v236, 64
        %vm1032 = vmand %vm1030, %vm1031
        %1033 = vst.msk [vmem:[#allocation4] sm:$0x1] %vm1032, %v1028
        %v1034 = vld [vmem:[#allocation2 + $0x7] sm:$0x1]
        %v1037 = vunpack.c.l.s4 1966171168
        %v1038 = vunpack.c.0.s8 %v1037
        %v1039 = vlaneseq
        %v1040 = vshrl.u32 %v1039, 7
        %v1041 = vsub.s32 %v1038, %v1040
        %v1042 = vrot.slane %v1034, %v1041
        %v1044 = vunpack.c.l.s4 1966171168
        %v1045 = vunpack.c.0.s8 %v1044
        %v1046 = vlaneseq
        %v1047 = vshrl.u32 %v1046, 7
        %v1048 = vsub.s32 %v1045, %v1047
        %v1049 = vrot.slane %v1042, %v1048
        %1050 = vrot.lane.b32.xlu0 %v1049, 61
        %v1051 = vpop.permute.xlu0 %1050
        %vm1053 = vcmp.ge.s32.totalorder %v236, 64
        %vm1054 = vcmp.lt.s32.totalorder %v236, 80
        %vm1055 = vmand %vm1053, %vm1054
        %1056 = vst.msk [vmem:[#allocation4] sm:$0x1] %vm1055, %v1051
        %v1057 = vld [vmem:[#allocation2 + $0x8] sm:$0x1]
        %v1060 = vunpack.c.l.s4 1966171168
        %v1061 = vunpack.c.0.s8 %v1060
        %v1062 = vlaneseq
        %v1063 = vshrl.u32 %v1062, 7
        %v1064 = vsub.s32 %v1061, %v1063
        %v1065 = vrot.slane %v1057, %v1064
        %v1067 = vunpack.c.l.s4 1966171168
        %v1068 = vunpack.c.0.s8 %v1067
        %v1069 = vlaneseq
        %v1070 = vshrl.u32 %v1069, 7
        %v1071 = vsub.s32 %v1068, %v1070
        %v1072 = vrot.slane %v1065, %v1071
        %1073 = vrot.lane.b32.xlu0 %v1072, 77
        %v1074 = vpop.permute.xlu0 %1073
        %vm1076 = vcmp.ge.s32.totalorder %v236, 80
        %vm1077 = vcmp.lt.s32.totalorder %v236, 96
        %vm1078 = vmand %vm1076, %vm1077
        %1079 = vst.msk [vmem:[#allocation4] sm:$0x1] %vm1078, %v1074
        %v1080 = vld [vmem:[#allocation2 + $0x9] sm:$0x1]
        %v1083 = vunpack.c.l.s4 1966171168
        %v1084 = vunpack.c.0.s8 %v1083
        %v1085 = vlaneseq
        %v1086 = vshrl.u32 %v1085, 7
        %v1087 = vsub.s32 %v1084, %v1086
        %v1088 = vrot.slane %v1080, %v1087
        %v1090 = vunpack.c.l.s4 1966171168
        %v1091 = vunpack.c.0.s8 %v1090
        %v1092 = vlaneseq
        %v1093 = vshrl.u32 %v1092, 7
        %v1094 = vsub.s32 %v1091, %v1093
        %v1095 = vrot.slane %v1088, %v1094
        %1096 = vrot.lane.b32.xlu0 %v1095, 93
        %v1097 = vpop.permute.xlu0 %1096
        %vm1099 = vcmp.ge.s32.totalorder %v236, 96
        %vm1100 = vcmp.lt.s32.totalorder %v236, 112
        %vm1101 = vmand %vm1099, %vm1100
        %1102 = vst.msk [vmem:[#allocation4] sm:$0x1] %vm1101, %v1097
        %v1103 = vld [vmem:[#allocation2 + $0xa] sm:$0x1]
        %v1106 = vunpack.c.l.s4 1966171168
        %v1107 = vunpack.c.0.s8 %v1106
        %v1108 = vlaneseq
        %v1109 = vshrl.u32 %v1108, 7
        %v1110 = vsub.s32 %v1107, %v1109
        %v1111 = vrot.slane %v1103, %v1110
        %v1113 = vunpack.c.l.s4 1966171168
        %v1114 = vunpack.c.0.s8 %v1113
        %v1115 = vlaneseq
        %v1116 = vshrl.u32 %v1115, 7
        %v1117 = vsub.s32 %v1114, %v1116
        %v1118 = vrot.slane %v1111, %v1117
        %1119 = vrot.lane.b32.xlu0 %v1118, 109
        %v1120 = vpop.permute.xlu0 %1119
        %vm1122 = vcmp.ge.s32.totalorder %v236, 112
        %vm1123 = vcmp.lt.s32.totalorder %v236, 128
        %vm1124 = vmand %vm1122, %vm1123
        %1125 = vst.msk [vmem:[#allocation4] sm:$0x1] %vm1124, %v1120
        %v1126 = vld [vmem:[#allocation2 + $0xb] sm:$0x1]
        %v1129 = vunpack.c.l.s4 1966171168
        %v1130 = vunpack.c.0.s8 %v1129
        %v1131 = vlaneseq
        %v1132 = vshrl.u32 %v1131, 7
        %v1133 = vsub.s32 %v1130, %v1132
        %v1134 = vrot.slane %v1126, %v1133
        %v1136 = vunpack.c.l.s4 1966171168
        %v1137 = vunpack.c.0.s8 %v1136
        %v1138 = vlaneseq
        %v1139 = vshrl.u32 %v1138, 7
        %v1140 = vsub.s32 %v1137, %v1139
        %v1141 = vrot.slane %v1134, %v1140
        %1142 = vrot.lane.b32.xlu0 %v1141, 125
        %v1143 = vpop.permute.xlu0 %1142
        %1145 = vst.msk [vmem:[#allocation4 + $0x1] sm:$0x1] %vm963, %v1143
        %v1146 = vld [vmem:[#allocation2 + $0xc] sm:$0x1]
        %v1149 = vunpack.c.l.s4 1966171168
        %v1150 = vunpack.c.0.s8 %v1149
        %v1151 = vlaneseq
        %v1152 = vshrl.u32 %v1151, 7
        %v1153 = vsub.s32 %v1150, %v1152
        %v1154 = vrot.slane %v1146, %v1153
        %v1156 = vunpack.c.l.s4 1966171168
        %v1157 = vunpack.c.0.s8 %v1156
        %v1158 = vlaneseq
        %v1159 = vshrl.u32 %v1158, 7
        %v1160 = vsub.s32 %v1157, %v1159
        %v1161 = vrot.slane %v1154, %v1160
        %1162 = vrot.lane.b32.xlu0 %v1161, 13
        %v1163 = vpop.permute.xlu0 %1162
        %1165 = vst.msk [vmem:[#allocation4 + $0x1] sm:$0x1] %vm986, %v1163
        %v1166 = vld [vmem:[#allocation2 + $0xd] sm:$0x1]
        %v1169 = vunpack.c.l.s4 1966171168
        %v1170 = vunpack.c.0.s8 %v1169
        %v1171 = vlaneseq
        %v1172 = vshrl.u32 %v1171, 7
        %v1173 = vsub.s32 %v1170, %v1172
        %v1174 = vrot.slane %v1166, %v1173
        %v1176 = vunpack.c.l.s4 1966171168
        %v1177 = vunpack.c.0.s8 %v1176
        %v1178 = vlaneseq
        %v1179 = vshrl.u32 %v1178, 7
        %v1180 = vsub.s32 %v1177, %v1179
        %v1181 = vrot.slane %v1174, %v1180
        %1182 = vrot.lane.b32.xlu0 %v1181, 29
        %v1183 = vpop.permute.xlu0 %1182
        %1185 = vst.msk [vmem:[#allocation4 + $0x1] sm:$0x1] %vm1009, %v1183
        %v1186 = vld [vmem:[#allocation2 + $0xe] sm:$0x1]
        %v1189 = vunpack.c.l.s4 1966171168
        %v1190 = vunpack.c.0.s8 %v1189
        %v1191 = vlaneseq
        %v1192 = vshrl.u32 %v1191, 7
        %v1193 = vsub.s32 %v1190, %v1192
        %v1194 = vrot.slane %v1186, %v1193
        %v1196 = vunpack.c.l.s4 1966171168
        %v1197 = vunpack.c.0.s8 %v1196
        %v1198 = vlaneseq
        %v1199 = vshrl.u32 %v1198, 7
        %v1200 = vsub.s32 %v1197, %v1199
        %v1201 = vrot.slane %v1194, %v1200
        %1202 = vrot.lane.b32.xlu0 %v1201, 45
        %v1203 = vpop.permute.xlu0 %1202
        %1205 = vst.msk [vmem:[#allocation4 + $0x1] sm:$0x1] %vm1032, %v1203
        %v1206 = vld [vmem:[#allocation2 + $0xf] sm:$0x1]
        %v1209 = vunpack.c.l.s4 1966171168
        %v1210 = vunpack.c.0.s8 %v1209
        %v1211 = vlaneseq
        %v1212 = vshrl.u32 %v1211, 7
        %v1213 = vsub.s32 %v1210, %v1212
        %v1214 = vrot.slane %v1206, %v1213
        %v1216 = vunpack.c.l.s4 1966171168
        %v1217 = vunpack.c.0.s8 %v1216
        %v1218 = vlaneseq
        %v1219 = vshrl.u32 %v1218, 7
        %v1220 = vsub.s32 %v1217, %v1219
        %v1221 = vrot.slane %v1214, %v1220
        %1222 = vrot.lane.b32.xlu0 %v1221, 61
        %v1223 = vpop.permute.xlu0 %1222
        %1225 = vst.msk [vmem:[#allocation4 + $0x1] sm:$0x1] %vm1055, %v1223
        %v1226 = vld [vmem:[#allocation2 + $0x10] sm:$0x1]
        %v1229 = vunpack.c.l.s4 1966171168
        %v1230 = vunpack.c.0.s8 %v1229
        %v1231 = vlaneseq
        %v1232 = vshrl.u32 %v1231, 7
        %v1233 = vsub.s32 %v1230, %v1232
        %v1234 = vrot.slane %v1226, %v1233
        %v1236 = vunpack.c.l.s4 1966171168
        %v1237 = vunpack.c.0.s8 %v1236
        %v1238 = vlaneseq
        %v1239 = vshrl.u32 %v1238, 7
        %v1240 = vsub.s32 %v1237, %v1239
        %v1241 = vrot.slane %v1234, %v1240
        %1242 = vrot.lane.b32.xlu0 %v1241, 77
        %v1243 = vpop.permute.xlu0 %1242
        %1245 = vst.msk [vmem:[#allocation4 + $0x1] sm:$0x1] %vm1078, %v1243
        %v1246 = vld [vmem:[#allocation2 + $0x11] sm:$0x1]
        %v1249 = vunpack.c.l.s4 1966171168
        %v1250 = vunpack.c.0.s8 %v1249
        %v1251 = vlaneseq
        %v1252 = vshrl.u32 %v1251, 7
        %v1253 = vsub.s32 %v1250, %v1252
        %v1254 = vrot.slane %v1246, %v1253
        %v1256 = vunpack.c.l.s4 1966171168
        %v1257 = vunpack.c.0.s8 %v1256
        %v1258 = vlaneseq
        %v1259 = vshrl.u32 %v1258, 7
        %v1260 = vsub.s32 %v1257, %v1259
        %v1261 = vrot.slane %v1254, %v1260
        %1262 = vrot.lane.b32.xlu0 %v1261, 93
        %v1263 = vpop.permute.xlu0 %1262
        %1265 = vst.msk [vmem:[#allocation4 + $0x1] sm:$0x1] %vm1101, %v1263
        %v1266 = vld [vmem:[#allocation2 + $0x12] sm:$0x1]
        %v1269 = vunpack.c.l.s4 1966171168
        %v1270 = vunpack.c.0.s8 %v1269
        %v1271 = vlaneseq
        %v1272 = vshrl.u32 %v1271, 7
        %v1273 = vsub.s32 %v1270, %v1272
        %v1274 = vrot.slane %v1266, %v1273
        %v1276 = vunpack.c.l.s4 1966171168
        %v1277 = vunpack.c.0.s8 %v1276
        %v1278 = vlaneseq
        %v1279 = vshrl.u32 %v1278, 7
        %v1280 = vsub.s32 %v1277, %v1279
        %v1281 = vrot.slane %v1274, %v1280
        %1282 = vrot.lane.b32.xlu0 %v1281, 109
        %v1283 = vpop.permute.xlu0 %1282
        %1285 = vst.msk [vmem:[#allocation4 + $0x1] sm:$0x1] %vm1124, %v1283
        %v1286 = vld [vmem:[%s180] sm:$0xff]
        %v1287 = vld [vmem:[#allocation4] sm:$0x3]
        %v1289 = vlaneseq
        %v1290 = vshrl.u32 %v1289, 7
        %v1291 = vsub.s32 0, %v1290
        %v1292 = vrot.slane %v1287, %v1291
        %v1293 = vlaneseq
        %v1294 = vshrl.u32 %v1293, 7
        %v1295 = vsub.s32 1, %v1294
        %v1296 = vrot.slane %v1287, %v1295
        %v1297 = vcombine.low %v1292, %v1296
        %v1299 = vmul.f32 %v1286, %v1297
        %1300 = vst [vmem:[%s185] sm:$0xff] %v1299
        %p1301 = scmp.lt.s32.totalorder %s16, 1
        %s1302 = scalar_select %p1301, %s16, 1
        %s1303 = smul.addr %s1302, 2
        %s1304 = smul.addr %s1303, 4
        %s1305 = scalar_lea.vmem %s3, %s1304
        // Predicated region
        $region37: #{spatial_gate.1} parent=31 // pred_check
          %p1306 = pneg %p102
        $region38: #{spatial_gate.1} parent=31 // pred_check_branch
          %1308 = sbr.rel (%p1306) target = $region40
        $region39: #{spatial_gate.1} parent=31 // pred_region
          _
        $region40: #{spatial_gate.1} parent=31 // pred_fallthru
          _
      $region32: #{spatial_gate.1} parent=5 // pred_fallthru
        _
      %p1309 = scmp.le.s32.totalorder 2, %s11
      // Predicated region
      $region41: #{spatial_gate.1} parent=5 // pred_check
        %p1310 = pneg %p1309
      $region42: #{spatial_gate.1} parent=5 // pred_check_branch
        %1312 = sbr.rel (%p1310) target = $region44
      $region43: #{spatial_gate.1} parent=5 // pred_region
        %s1313 = ssub.s32 %s11, 2
        // Predicated region
        $region45: #{spatial_gate.1} parent=43 // pred_check
          %p1314 = pneg %p108
        $region46: #{spatial_gate.1} parent=43 // pred_check_branch
          %1316 = sbr.rel (%p1314) target = $region48
        $region47: #{spatial_gate.1} parent=43 // pred_region
          %p1317 = scmp.lt.s32.totalorder %s17, 1
          %s1318 = scalar_select %p1317, %s17, 1
          %s1319 = smul.addr %s1318, 2
          %s1320 = smul.addr %s1319, 4
          %s1321 = scalar_lea.vmem %s3, %s1320
        $region48: #{spatial_gate.1} parent=43 // pred_fallthru
          _
      $region44: #{spatial_gate.1} parent=5 // pred_fallthru
        _
    $region6: #{spatial_gate.1} parent=1 // loop_footer
      %s15 = sadd.s32 1, %s11
    $region7: #{spatial_gate.1} parent=1 // loop_footer_branch
      %10 = sbr.rel target = $region3
    $region8: #{spatial_gate.1} parent=1 // loop_exit
      _
    %1322 = vsyncpa [#allocation7], 1
    %s1323 = scalar_lea.sflag [#allocation7], 1
    %1324 = vsyncpa %s1323, 1

</llo_original>
